<compile_context>
chip_gen: v7x
topology: tpu7x:2x2x1
jax: 0.10.0
libtpu: 0.0.40
codegen_flags: <defaults>
</compile_context>

<pallas_src>
import functools
import numpy as np

import jax
import jax.numpy as jnp
from jax.experimental import pallas as pl
from jax.experimental.pallas import tpu as pltpu


def _round_up(x, m):
    return ((x + m - 1) // m) * m


# ----------------------------------------------------------------------------
# Pallas kernel: one (TN query-rows x TM target-lanes) tile of the cost matrix
# ----------------------------------------------------------------------------
def _cost_kernel(q_ref, t_ref, c_ref, *, kc, kb, w_giou):
    # q_ref: [TN, 8]  packed query columns  [score, x1, y1, x2, y2, 0, 0, 0]
    # t_ref: [8, TM]  packed target rows    [score, x1, y1, x2, y2, 0, 0, 0]
    q = q_ref[...]
    t = t_ref[...]
    qs, qx1, qy1, qx2, qy2 = (q[:, 0:1], q[:, 1:2], q[:, 2:3],
                              q[:, 3:4], q[:, 4:5])          # [TN, 1]
    ts, tx1, ty1, tx2, ty2 = (t[0:1, :], t[1:2, :], t[2:3, :],
                              t[3:4, :], t[4:5, :])          # [1, TM]

    # ---- classification cost: |pred_score_i - tgt_score_j| (pre-weighted) ----
    cost_class = jnp.abs(qs - ts)                            # [TN, TM]

    # ---- L1 bbox cost (coords pre-weighted by w_bbox when w_bbox > 0) ----
    cost_bbox = (jnp.abs(qx1 - tx1) + jnp.abs(qy1 - ty1)
                 + jnp.abs(qx2 - tx2) + jnp.abs(qy2 - ty2))  # [TN, TM]

    # ---- IoU (box_iou, xyxy); invariant to the w_bbox coordinate scaling ----
    area_q = (qx2 - qx1) * (qy2 - qy1)                       # [TN, 1]
    area_t = (tx2 - tx1) * (ty2 - ty1)                       # [1, TM]
    iw = jnp.maximum(jnp.minimum(qx2, tx2) - jnp.maximum(qx1, tx1), 0.0)
    ih = jnp.maximum(jnp.minimum(qy2, ty2) - jnp.maximum(qy1, ty1), 0.0)
    inter = iw * ih
    union = area_q + area_t - inter
    # approx reciprocal on the EUP slot (no VPU Newton refine); ~12-bit.
    iou = inter * pl.reciprocal(union, approx=True)          # [TN, TM]

    c = cost_bbox if kb == 1.0 else kb * cost_bbox
    c = c + (cost_class if kc == 1.0 else kc * cost_class)
    c = c - w_giou * iou
    c_ref[...] = c.astype(c_ref.dtype)


# ----------------------------------------------------------------------------
# Tiling / fallback helpers
# ----------------------------------------------------------------------------
_TM_CANDIDATES = (2048, 1024, 512, 256, 128)
_MAX_OUT_TILE_BYTES = 4 << 20     # 4 MiB out tile -> 8 MiB double-buffered
_USE_PALLAS_MIN_ELEMS = 1 << 17   # ~128K padded elements


def _choose_tiles(Np, Mp):
    # Lane tile: largest candidate dividing Mp (Mp is a multiple of 128).
    TM = next(c for c in _TM_CANDIDATES if Mp % c == 0)
    # Sublane tile: largest divisor of Np (multiple of 8) keeping the output
    # tile <= 4 MiB so everything fits v5e's 16 MiB scoped-VMEM default.
    tn_max = min(1024, _MAX_OUT_TILE_BYTES // (TM * 4))
    tn_max = max(8, (min(tn_max, Np) // 8) * 8)
    TN = 8
    for d in range(tn_max, 7, -8):
        if Np % d == 0:
            TN = d
            break
    # Megacore (v7x has 2 TCs): ensure >= 2 tiles along a parallel axis.
    if (Np // TN) * (Mp // TM) == 1:
        if TM >= 256:
            TM //= 2
        elif TN >= 16 and TN % 16 == 0:
            TN //= 2
    return TN, TM


def _cost_matrix_jnp(op, ob, tp, tb, w_class, w_bbox, w_giou):
    cost_class = jnp.abs(op - tp.T)
    cost_bbox = jnp.abs(ob[:, None, :] - tb[None, :, :]).sum(-1)
    area_p = (ob[:, 2] - ob[:, 0]) * (ob[:, 3] - ob[:, 1])
    area_t = (tb[:, 2] - tb[:, 0]) * (tb[:, 3] - tb[:, 1])
    lt = jnp.maximum(ob[:, None, :2], tb[None, :, :2])
    rb = jnp.minimum(ob[:, None, 2:], tb[None, :, 2:])
    wh = jnp.maximum(rb - lt, 0.0)
    inter = wh[..., 0] * wh[..., 1]
    iou = inter / (area_p[:, None] + area_t[None, :] - inter)
    return w_bbox * cost_bbox + w_class * cost_class - w_giou * iou


# ----------------------------------------------------------------------------
# Wrapper: packing, padding, tiling, pallas_call (with small-problem fallback)
# ----------------------------------------------------------------------------
def compute_cost_matrix(out_prob, out_bbox, tgt_prob, tgt_bbox,
                        w_class=1.0, w_bbox=1.0, w_giou=1.0, use_pallas=None):
    """Combined matching cost matrix (float32).

    Pallas path returns the [Np, Mp] matrix padded to (8, 128) multiples; the
    caller slices [:N, :M] (done on the host in hungarian_matcher_custom so no
    extra on-device copy is made).  The jnp fallback returns exactly [N, M].
    """
    assert out_prob.shape[-1] == 1 and tgt_prob.shape[-1] == 1, (
        "cost_class broadcast (out_prob - tgt_prob.T) is only valid for "
        "num_classes == 1")

    N = out_prob.shape[0]
    M = tgt_prob.shape[0]
    op = jnp.asarray(out_prob, jnp.float32)
    ob = jnp.asarray(out_bbox, jnp.float32)
    tp = jnp.asarray(tgt_prob, jnp.float32)
    tb = jnp.asarray(tgt_bbox, jnp.float32)

    if use_pallas is None:
        use_pallas = (_round_up(N, 8) * _round_up(M, 128)
                      >= _USE_PALLAS_MIN_ELEMS)
    if not use_pallas:
        return _cost_matrix_jnp(op, ob, tp, tb, w_class, w_bbox, w_giou)

    Np = _round_up(N, 8)
    Mp = _round_up(M, 128)
    TN, TM = _choose_tiles(Np, Mp)

    # Fold positive weights into the O(N+M) inputs once.  IoU is invariant to
    # uniform positive coordinate scaling, so scaling by w_bbox pre-weights
    # the L1 term without changing IoU.  Non-positive weights stay in-kernel.
    kc = 1.0
    scores_q, scores_t = op[:, 0], tp[:, 0]
    if w_class >= 0.0:
        scores_q = scores_q * w_class
        scores_t = scores_t * w_class
    else:
        kc = float(w_class)
    kb = 1.0
    boxes_q, boxes_t = ob, tb
    if w_bbox > 0.0:
        boxes_q = boxes_q * w_bbox
        boxes_t = boxes_t * w_bbox
    else:
        kb = float(w_bbox)

    # Packed inputs (2 DMAs per block change).  Padded rows/cols get dummy
    # [0,0,1,1] boxes (area 1) so union never hits 0 in the padded region;
    # the padded region is sliced away by the caller.
    q_pack = jnp.zeros((Np, 8), jnp.float32)
    q_pack = q_pack.at[:, 3:5].set(1.0)
    q_pack = q_pack.at[:N, 0].set(scores_q)
    q_pack = q_pack.at[:N, 1:5].set(boxes_q)

    t_pack = jnp.zeros((8, Mp), jnp.float32)
    t_pack = t_pack.at[3:5, :].set(1.0)
    t_pack = t_pack.at[0, :M].set(scores_t)
    t_pack = t_pack.at[1:5, :M].set(boxes_t.T)

    kernel = functools.partial(_cost_kernel, kc=kc, kb=kb,
                               w_giou=float(w_giou))

    return pl.pallas_call(
        kernel,
        out_shape=jax.ShapeDtypeStruct((Np, Mp), jnp.float32),
        grid=(Np // TN, Mp // TM),
        in_specs=[pl.BlockSpec((TN, 8), lambda i, j: (i, 0)),
                  pl.BlockSpec((8, TM), lambda i, j: (0, j))],
        out_specs=pl.BlockSpec((TN, TM), lambda i, j: (i, j)),
        compiler_params=pltpu.CompilerParams(
            dimension_semantics=("parallel", "parallel")),
    )(q_pack, t_pack)


# ----------------------------------------------------------------------------
# Host-side Hungarian algorithm (rectangular min-cost assignment, JV-style,
# numpy-vectorized inner loop).
# TODO(synk): linear_sum_assignment is a sequential combinatorial algorithm
#             with no clean Pallas equivalent; it runs on the host.
# ----------------------------------------------------------------------------
def linear_sum_assignment_np(cost):
    cost = np.asarray(cost, dtype=np.float64)
    transposed = False
    if cost.shape[0] > cost.shape[1]:
        cost = cost.T
        transposed = True
    n, m = cost.shape  # n <= m
    INF = np.inf
    u = np.zeros(n + 1, dtype=np.float64)
    v = np.zeros(m + 1, dtype=np.float64)
    p = np.zeros(m + 1, dtype=np.int64)    # p[j] = row matched to column j (1-based)
    way = np.zeros(m + 1, dtype=np.int64)
    for i in range(1, n + 1):
        p[0] = i
        j0 = 0
        minv = np.full(m + 1, INF, dtype=np.float64)
        used = np.zeros(m + 1, dtype=bool)
        while True:
            used[j0] = True
            i0 = p[j0]
            free = ~used[1:]
            cur = cost[i0 - 1, :] - u[i0] - v[1:]
            upd = free & (cur < minv[1:])
            if upd.any():
                minv[1:][upd] = cur[upd]
                way[1:][upd] = j0
            masked = np.where(free, minv[1:], INF)
            j1 = int(np.argmin(masked)) + 1
            delta = masked[j1 - 1]
            u[p[used]] += delta            # indices are distinct rows -> safe
            v[used] -= delta
            minv[1:][free] -= delta
            j0 = j1
            if p[j0] == 0:
                break
        while True:                         # augment along the found path
            j1 = way[j0]
            p[j0] = p[j1]
            j0 = j1
            if j0 == 0:
                break
    rows = p[1:]
    cols = np.arange(1, m + 1)
    valid = rows != 0
    row_ind = rows[valid] - 1
    col_ind = cols[valid] - 1
    if transposed:
        row_ind, col_ind = col_ind, row_ind
    order = np.argsort(row_ind, kind="stable")
    return row_ind[order], col_ind[order]


# ----------------------------------------------------------------------------
# Forward pass mirroring HungarianMatcherCustom.forward
# ----------------------------------------------------------------------------
def hungarian_matcher_custom(outputs, targets, cost_class=1.0, cost_bbox=1.0,
                             cost_giou=1.0, special=False, use_pallas=None):
    assert cost_class != 0 or cost_bbox != 0 or cost_giou != 0, "all costs cant be 0"
    bs, num_queries = outputs["pred_logits"].shape[:2]

    out_prob = outputs["pred_logits"].reshape(-1, outputs["pred_logits"].shape[-1])
    out_bbox = outputs["pred_boxes"].reshape(-1, 4)
    tgt_prob = targets["pred_logits"].reshape(-1, targets["pred_logits"].shape[-1])
    tgt_bbox = targets["pred_boxes"].reshape(-1, 4)
    N = out_prob.shape[0]
    M = tgt_bbox.shape[0]

    C_dev = compute_cost_matrix(out_prob, out_bbox, tgt_prob, tgt_bbox,
                                w_class=cost_class, w_bbox=cost_bbox,
                                w_giou=cost_giou, use_pallas=use_pallas)

    # Single device->host transfer of the (possibly 8/128-padded) matrix; all
    # remaining work (Hungarian, matched-pair sums) is tiny host numpy.
    C_host = np.asarray(jax.device_get(C_dev))[:N, :M]

    # Reference splits along the last dim with sizes=[M] -> a single chunk, so
    # only batch element 0 ever gets an assignment (quirk preserved on purpose).
    C0 = C_host.reshape(bs, num_queries, M)[0]
    row_ind, col_ind = linear_sum_assignment_np(C0)

    # Recompute unweighted class / bbox costs only for the matched pairs
    # (tiny host gathers) instead of materializing full C_class / C_bbox.
    op_h = np.asarray(jax.device_get(out_prob), np.float32)
    ob_h = np.asarray(jax.device_get(out_bbox), np.float32)
    tp_h = np.asarray(jax.device_get(tgt_prob), np.float32)
    tb_h = np.asarray(jax.device_get(tgt_bbox), np.float32)

    c_sel = C0[row_ind, col_ind]
    cc_sel = np.abs(op_h[row_ind, 0] - tp_h[col_ind, 0])
    cb_sel = np.abs(ob_h[row_ind] - tb_h[col_ind]).sum(-1)

    if special:
        keep = (-c_sel) > 0.5
    else:
        keep = np.ones(len(row_ind), dtype=bool)

    selected_entries = [float(v) for v in c_sel[keep]]
    cost_class_sum = float(cc_sel[keep].sum())
    cost_bbox_sum = float(cb_sel[keep].sum())
    if special:
        # Reference's special branch accumulates C_class into `cost`.
        cost_sum = cost_class_sum
    else:
        cost_sum = float(c_sel[keep].sum())

    # (Reference prints selected_entries/cost here; omitted.)
    return (cost_sum, len(selected_entries), selected_entries,
            cost_class_sum, cost_bbox_sum)


# ----------------------------------------------------------------------------
# Numpy reference for validation
# ----------------------------------------------------------------------------
def _ref_cost_pieces(out_prob, out_bbox, tgt_prob, tgt_bbox):
    op = np.asarray(out_prob, np.float32)
    ob = np.asarray(out_bbox, np.float32)
    tp = np.asarray(tgt_prob, np.float32)
    tb = np.asarray(tgt_bbox, np.float32)
    cc = np.abs(op - tp.T)
    cb = np.abs(ob[:, None, :] - tb[None, :, :]).sum(-1)
    area_p = (ob[:, 2] - ob[:, 0]) * (ob[:, 3] - ob[:, 1])
    area_t = (tb[:, 2] - tb[:, 0]) * (tb[:, 3] - tb[:, 1])
    lt = np.maximum(ob[:, None, :2], tb[None, :, :2])
    rb = np.minimum(ob[:, None, 2:], tb[None, :, 2:])
    wh = np.clip(rb - lt, 0.0, None)
    inter = wh[..., 0] * wh[..., 1]
    iou = inter / (area_p[:, None] + area_t[None, :] - inter)
    return cc, cb, iou


def _ref_forward(outputs, targets, cost_class=1.0, cost_bbox=1.0,
                 cost_giou=1.0, special=False):
    bs, num_queries = outputs["pred_logits"].shape[:2]
    op = np.asarray(outputs["pred_logits"], np.float32).reshape(
        -1, outputs["pred_logits"].shape[-1])
    ob = np.asarray(outputs["pred_boxes"], np.float32).reshape(-1, 4)
    tp = np.asarray(targets["pred_logits"], np.float32).reshape(
        -1, targets["pred_logits"].shape[-1])
    tb = np.asarray(targets["pred_boxes"], np.float32).reshape(-1, 4)
    cc, cb, iou = _ref_cost_pieces(op, ob, tp, tb)
    C = cost_bbox * cb + cost_class * cc - cost_giou * iou
    M = tb.shape[0]
    C0 = C.reshape(bs, num_queries, M)[0]
    cc0 = cc.reshape(bs, num_queries, M)[0]
    cb0 = cb.reshape(bs, num_queries, M)[0]
    rows, cols = linear_sum_assignment_np(C0)
    cost = 0.0
    cclass = 0.0
    cbbox = 0.0
    sel = []
    for i, j in zip(rows, cols):
        if special:
            if -C0[i, j] > 0.5:
                cost += cc0[i, j]
                sel.append(C0[i, j])
                cclass += cc0[i, j]
                cbbox += cb0[i, j]
        else:
            cost += C0[i, j]
            sel.append(C0[i, j])
            cclass += cc0[i, j]
            cbbox += cb0[i, j]
    return cost, len(sel), sel, cclass, cbbox


if __name__ == "__main__":
    key = jax.random.PRNGKey(0)

    def rand_boxes(k, n):
        xy = jax.random.uniform(k, (n, 2), minval=0.0, maxval=0.5)
        wh = jax.random.uniform(jax.random.fold_in(k, 1), (n, 2),
                                minval=0.1, maxval=0.5)
        return jnp.concatenate([xy, xy + wh], axis=-1)  # xyxy

    # --- 1) Validate the Pallas kernel cost matrix (forced Pallas path) -------
    kq, kbx, kt, ktb, k1, k2, k3, k4 = jax.random.split(key, 8)
    Nk, Mk = 256, 200
    op_k = jax.random.normal(kq, (Nk, 1), jnp.float32)
    ob_k = rand_boxes(kbx, Nk)
    tp_k = jax.random.normal(kt, (Mk, 1), jnp.float32)
    tb_k = rand_boxes(ktb, Mk)
    C_pad = compute_cost_matrix(op_k, ob_k, tp_k, tb_k,
                                w_class=2.0, w_bbox=5.0, w_giou=2.0,
                                use_pallas=True)
    jax.block_until_ready(C_pad)
    C_np = np.asarray(C_pad)[:Nk, :Mk]            # padded -> slice on host
    cc_r, cb_r, iou_r = _ref_cost_pieces(op_k, ob_k, tp_k, tb_k)
    C_ref = 5.0 * cb_r + 2.0 * cc_r - 2.0 * iou_r
    # Tolerance relaxed for pl.reciprocal(approx=True) (~12-bit reciprocal).
    np.testing.assert_allclose(C_np, C_ref, rtol=1e-3, atol=1e-2)

    # --- 2) Tiny-problem jnp fallback path (exact divide) ---------------------
    C_tiny = compute_cost_matrix(op_k[:8], ob_k[:8], tp_k[:5], tb_k[:5])
    cc_t, cb_t, iou_t = _ref_cost_pieces(op_k[:8], ob_k[:8], tp_k[:5], tb_k[:5])
    np.testing.assert_allclose(np.asarray(C_tiny), cb_t + cc_t - iou_t,
                               rtol=1e-5, atol=1e-5)

    # --- 3) Full forward pass (non-special) vs numpy reference ----------------
    bs, num_queries, num_targets, num_classes = 1, 128, 32, 1  # num_classes must be 1
    outputs = {
        "pred_logits": jax.random.normal(k1, (bs, num_queries, num_classes),
                                         jnp.float32),
        "pred_boxes": rand_boxes(k2, bs * num_queries).reshape(bs, num_queries, 4),
    }
    targets = {
        "pred_logits": jax.random.normal(k3, (bs, num_targets, num_classes),
                                         jnp.float32),
        "pred_boxes": rand_boxes(k4, bs * num_targets).reshape(bs, num_targets, 4),
    }
    cost, n_sel, selected, cc_sum, cb_sum = hungarian_matcher_custom(
        outputs, targets)
    r_cost, r_n, r_sel, r_cc, r_cb = _ref_forward(outputs, targets)
    assert n_sel == r_n == min(num_queries, bs * num_targets)
    np.testing.assert_allclose(cost, r_cost, rtol=1e-4, atol=1e-4)
    np.testing.assert_allclose(cc_sum, r_cc, rtol=1e-4, atol=1e-4)
    np.testing.assert_allclose(cb_sum, r_cb, rtol=1e-4, atol=1e-4)

    # --- 4) Forward pass forced through the Pallas kernel ---------------------
    cost_p, n_p, sel_p, ccp, cbp = hungarian_matcher_custom(
        outputs, targets, use_pallas=True)
    assert n_p == min(num_queries, bs * num_targets)
    assert np.isfinite(cost_p)
    assert abs(cost_p - r_cost) < 5e-2  # approx-reciprocal perturbation bound

    # --- 5) special=True smoke test --------------------------------------------
    cost_sp, n_sp, sel_sp, ccs_sp, cbs_sp = hungarian_matcher_custom(
        outputs, targets, special=True)
    assert n_sp <= min(num_queries, bs * num_targets)
    assert n_sp == len(sel_sp)

    print("KERNEL_OK")
</pallas_src>

<mosaic_0001>
module attributes {stable_mosaic.version = 11 : i64} {
  func.func @_cost_kernel(%arg0: i32, %arg1: i32, %arg2: memref<256x8xf32, #tpu.memory_space<vmem>>, %arg3: memref<8x128xf32, #tpu.memory_space<vmem>>, %arg4: memref<256x128xf32, #tpu.memory_space<vmem>>) attributes {dimension_semantics = [#tpu.dimension_semantics<parallel>, #tpu.dimension_semantics<parallel>], iteration_bounds = array<i64: 1, 2>, scalar_prefetch = 0 : i64, scratch_operands = 0 : i64, tpu.core_type = #tpu.core_type<tc>, window_params = [{transform_indices = @transform_0, window_bounds = array<i64: 256, 8>}, {transform_indices = @transform_1, window_bounds = array<i64: 8, 128>}, {transform_indices = @transform_2, window_bounds = array<i64: 256, 128>}]} {
    %c0 = arith.constant 0 : index
    %c0_0 = arith.constant 0 : index
    %0 = vector.load %arg2[%c0, %c0_0] : memref<256x8xf32, #tpu.memory_space<vmem>>, vector<256x8xf32>
    %c0_1 = arith.constant 0 : index
    %c0_2 = arith.constant 0 : index
    %1 = vector.load %arg3[%c0_1, %c0_2] : memref<8x128xf32, #tpu.memory_space<vmem>>, vector<8x128xf32>
    %2 = vector.extract_strided_slice %0 {offsets = [0, 0], sizes = [256, 1], strides = [1, 1]} : vector<256x8xf32> to vector<256x1xf32>
    %3 = vector.extract_strided_slice %0 {offsets = [0, 1], sizes = [256, 1], strides = [1, 1]} : vector<256x8xf32> to vector<256x1xf32>
    %4 = vector.extract_strided_slice %0 {offsets = [0, 2], sizes = [256, 1], strides = [1, 1]} : vector<256x8xf32> to vector<256x1xf32>
    %5 = vector.extract_strided_slice %0 {offsets = [0, 3], sizes = [256, 1], strides = [1, 1]} : vector<256x8xf32> to vector<256x1xf32>
    %6 = vector.extract_strided_slice %0 {offsets = [0, 4], sizes = [256, 1], strides = [1, 1]} : vector<256x8xf32> to vector<256x1xf32>
    %7 = vector.extract_strided_slice %1 {offsets = [0, 0], sizes = [1, 128], strides = [1, 1]} : vector<8x128xf32> to vector<1x128xf32>
    %8 = vector.extract_strided_slice %1 {offsets = [1, 0], sizes = [1, 128], strides = [1, 1]} : vector<8x128xf32> to vector<1x128xf32>
    %9 = vector.extract_strided_slice %1 {offsets = [2, 0], sizes = [1, 128], strides = [1, 1]} : vector<8x128xf32> to vector<1x128xf32>
    %10 = vector.extract_strided_slice %1 {offsets = [3, 0], sizes = [1, 128], strides = [1, 1]} : vector<8x128xf32> to vector<1x128xf32>
    %11 = vector.extract_strided_slice %1 {offsets = [4, 0], sizes = [1, 128], strides = [1, 1]} : vector<8x128xf32> to vector<1x128xf32>
    %12 = vector.broadcast %2 : vector<256x1xf32> to vector<256x128xf32>
    %13 = vector.broadcast %7 : vector<1x128xf32> to vector<256x128xf32>
    %14 = arith.subf %12, %13 : vector<256x128xf32>
    %15 = math.absf %14 : vector<256x128xf32>
    %16 = vector.broadcast %3 : vector<256x1xf32> to vector<256x128xf32>
    %17 = vector.broadcast %8 : vector<1x128xf32> to vector<256x128xf32>
    %18 = arith.subf %16, %17 : vector<256x128xf32>
    %19 = math.absf %18 : vector<256x128xf32>
    %20 = vector.broadcast %4 : vector<256x1xf32> to vector<256x128xf32>
    %21 = vector.broadcast %9 : vector<1x128xf32> to vector<256x128xf32>
    %22 = arith.subf %20, %21 : vector<256x128xf32>
    %23 = math.absf %22 : vector<256x128xf32>
    %24 = arith.addf %19, %23 : vector<256x128xf32>
    %25 = vector.broadcast %5 : vector<256x1xf32> to vector<256x128xf32>
    %26 = vector.broadcast %10 : vector<1x128xf32> to vector<256x128xf32>
    %27 = arith.subf %25, %26 : vector<256x128xf32>
    %28 = math.absf %27 : vector<256x128xf32>
    %29 = arith.addf %24, %28 : vector<256x128xf32>
    %30 = vector.broadcast %6 : vector<256x1xf32> to vector<256x128xf32>
    %31 = vector.broadcast %11 : vector<1x128xf32> to vector<256x128xf32>
    %32 = arith.subf %30, %31 : vector<256x128xf32>
    %33 = math.absf %32 : vector<256x128xf32>
    %34 = arith.addf %29, %33 : vector<256x128xf32>
    %35 = arith.subf %5, %3 : vector<256x1xf32>
    %36 = arith.subf %6, %4 : vector<256x1xf32>
    %37 = arith.mulf %35, %36 : vector<256x1xf32>
    %38 = arith.subf %10, %8 : vector<1x128xf32>
    %39 = arith.subf %11, %9 : vector<1x128xf32>
    %40 = arith.mulf %38, %39 : vector<1x128xf32>
    %41 = vector.broadcast %5 : vector<256x1xf32> to vector<256x128xf32>
    %42 = vector.broadcast %10 : vector<1x128xf32> to vector<256x128xf32>
    %43 = arith.minimumf %41, %42 : vector<256x128xf32>
    %44 = vector.broadcast %3 : vector<256x1xf32> to vector<256x128xf32>
    %45 = vector.broadcast %8 : vector<1x128xf32> to vector<256x128xf32>
    %46 = arith.maximumf %44, %45 : vector<256x128xf32>
    %47 = arith.subf %43, %46 : vector<256x128xf32>
    %cst = arith.constant 0.000000e+00 : f32
    %48 = vector.broadcast %cst : f32 to vector<256x128xf32>
    %49 = arith.maximumf %47, %48 : vector<256x128xf32>
    %50 = vector.broadcast %6 : vector<256x1xf32> to vector<256x128xf32>
    %51 = vector.broadcast %11 : vector<1x128xf32> to vector<256x128xf32>
    %52 = arith.minimumf %50, %51 : vector<256x128xf32>
    %53 = vector.broadcast %4 : vector<256x1xf32> to vector<256x128xf32>
    %54 = vector.broadcast %9 : vector<1x128xf32> to vector<256x128xf32>
    %55 = arith.maximumf %53, %54 : vector<256x128xf32>
    %56 = arith.subf %52, %55 : vector<256x128xf32>
    %cst_3 = arith.constant 0.000000e+00 : f32
    %57 = vector.broadcast %cst_3 : f32 to vector<256x128xf32>
    %58 = arith.maximumf %56, %57 : vector<256x128xf32>
    %59 = arith.mulf %49, %58 : vector<256x128xf32>
    %60 = vector.broadcast %37 : vector<256x1xf32> to vector<256x128xf32>
    %61 = vector.broadcast %40 : vector<1x128xf32> to vector<256x128xf32>
    %62 = arith.addf %60, %61 : vector<256x128xf32>
    %63 = arith.subf %62, %59 : vector<256x128xf32>
    %64 = tpu.reciprocal %63 {approx = true} : vector<256x128xf32> -> vector<256x128xf32>
    %65 = arith.mulf %59, %64 : vector<256x128xf32>
    %66 = arith.addf %34, %15 : vector<256x128xf32>
    %cst_4 = arith.constant 2.000000e+00 : f32
    %67 = vector.broadcast %cst_4 : f32 to vector<256x128xf32>
    %68 = arith.mulf %67, %65 : vector<256x128xf32>
    %69 = arith.subf %66, %68 : vector<256x128xf32>
    %c0_5 = arith.constant 0 : index
    %c0_6 = arith.constant 0 : index
    %70 = vector.load %arg4[%c0_5, %c0_6] : memref<256x128xf32, #tpu.memory_space<vmem>>, vector<256x128xf32>
    tpu.vector_store %arg4[%c0_5, %c0_6], %69 {strides = array<i32>} : memref<256x128xf32, #tpu.memory_space<vmem>>, vector<256x128xf32>,
    return
  }
  func.func @transform_0(%arg0: i32, %arg1: i32) -> (i32, i32) {
    %c0_i32 = arith.constant 0 : i32
    %c0_i32_0 = arith.constant 0 : i32
    return %arg0, %c0_i32 : i32, i32
  }
  func.func @transform_1(%arg0: i32, %arg1: i32) -> (i32, i32) {
    %c0_i32 = arith.constant 0 : i32
    %c0_i32_0 = arith.constant 0 : i32
    return %c0_i32, %arg1 : i32, i32
  }
  func.func @transform_2(%arg0: i32, %arg1: i32) -> (i32, i32) {
    %c0_i32 = arith.constant 0 : i32
    return %arg0, %arg1 : i32, i32
  }
}

</mosaic_0001>

<llo_original>
// kernel: tpu_custom_call.1
$region0: #{tpu_custom_call.1}
  #allocation0 [shape = 'u32[]', space=smem, size = 0x4, offset = 0x4, fixed_abs, tag = 'smem constant byte address 0x4 - core index']
  #allocation1 [shape = 'u32[144,128]{1,0:T(1,128)}', space=vmem, size = 0x12000, scoped, tag = 'internal scratch']
  %s0 = inlined_call_operand.vmem [shape: f32[256,8], index: 0, kind: input, shape index: {}]
  %s1 = inlined_call_operand.vmem [shape: f32[8,256], index: 1, kind: input, shape index: {}]
  %s2 = inlined_call_operand.hbm [shape: f32[256,256], index: 2, kind: output, shape index: {}]
  %s3 = sld [smem:[#allocation0]]
  $region41: #{tpu_custom_call.1} parent=0
    _
  %s5 = ssub.s32 1, %s3
  %s6 = scalar_select 0, %s5, %s3
  $region1: #{tpu_custom_call.1} parent=0
    #allocation2 [shape = 'u8[262144]{0}', space=vmem, size = 0x40000, scoped, tag = 'output window, operand 0']
    #allocation3 [shape = 's32[2]{0}', space=sflag, size = 0x8, scoped, tag = 'scoped memory for tpu_custom_call.1']
    %7 = vsyncpa [#allocation3], 0
    %s8 = scalar_lea.sflag [#allocation3], 1
    %9 = vsyncpa %s8, 0
    loop: start=0, step=1, limit=4
    $region2: #{tpu_custom_call.1} parent=1 // loop_pre_header
      _
    $region3: #{tpu_custom_call.1} parent=1 // loop_header
      %s11 = sphi 0, %s15
      %p12 = scmp.ge.s32.totalorder %s11, 4
      %s18 = sphi 0, %s30
      %s19 = sphi 0, %s26
      %s20 = sphi 0, %s18
      %s21 = sphi 0, %s19
      %s22 = sphi 0, %s20
      %s23 = sphi 0, %s21
      %s33 = sphi 0, %s35
      %s36 = sphi 0, %s33
      %s37 = sphi 0, %s36
      %s53 = sphi 0, %s37
      %s59 = sphi 0, %s61
      %s62 = sphi 0, %s59
      %s63 = sphi 0, %s62
      %s79 = sphi 0, %s63
      %s87 = sphi 0, %s89
      %s90 = sphi 0, %s87
      %s91 = sphi 0, %s90
      %s107 = sphi 0, %s91
    $region4: #{tpu_custom_call.1} parent=1 // loop_header_branch
      %14 = sbr.rel (%p12) target = $region8
    $region5: #{tpu_custom_call.1} parent=1 // loop_body
      %s16 = ssub.s32 %s11, 1
      %s17 = ssub.s32 %s11, 2
      %s24 = sadd.s32 1, %s19
      %p25 = scmp.ge.s32.totalorder %s24, 2
      %s26 = scalar_select %p25, 0, %s24
      %s27 = sadd.s32 1, %s18
      %s28 = scalar_select %p25, %s27, %s18
      %p29 = scmp.ge.s32.totalorder %s28, 1
      %s30 = scalar_select %p29, 0, %s28
      %s31 = ssub.s32 %s18, %s30
      %p32 = scmp.eq.s32.totalorder %s31, 0
      %s34 = sadd.s32 %s33, 1
      %s35 = scalar_select %p32, %s33, %s34
      %p38 = pneg %p32
      %p39 = scmp.eq.s32.totalorder %s11, 1
      %p40 = por %p38, %p39
      %p41 = scmp.ne.s32.totalorder %s33, %s36
      %p42 = scmp.eq.s32.totalorder %s11, 0
      %p43 = por %p41, %p42
      %p44 = scmp.ne.s32.totalorder %s33, %s36
      %p45 = scmp.eq.s32.totalorder %s16, 1
      %p46 = por %p44, %p45
      %p47 = scmp.ne.s32.totalorder %s36, %s37
      %p48 = scmp.eq.s32.totalorder %s16, 0
      %p49 = por %p47, %p48
      %p50 = scmp.ne.s32.totalorder %s36, %s37
      %p51 = scmp.eq.s32.totalorder %s17, 1
      %p52 = por %p50, %p51
      %p54 = scmp.ne.s32.totalorder %s37, %s53
      %p55 = scmp.eq.s32.totalorder %s17, 0
      %p56 = por %p54, %p55
      %s57 = ssub.s32 %s19, %s26
      %p58 = scmp.eq.s32.totalorder %s57, 0
      %s60 = sadd.s32 %s59, 1
      %s61 = scalar_select %p58, %s59, %s60
      %p64 = pneg %p58
      %p65 = scmp.eq.s32.totalorder %s11, 1
      %p66 = por %p64, %p65
      %p67 = scmp.ne.s32.totalorder %s59, %s62
      %p68 = scmp.eq.s32.totalorder %s11, 0
      %p69 = por %p67, %p68
      %p70 = scmp.ne.s32.totalorder %s59, %s62
      %p71 = scmp.eq.s32.totalorder %s16, 1
      %p72 = por %p70, %p71
      %p73 = scmp.ne.s32.totalorder %s62, %s63
      %p74 = scmp.eq.s32.totalorder %s16, 0
      %p75 = por %p73, %p74
      %p76 = scmp.ne.s32.totalorder %s62, %s63
      %p77 = scmp.eq.s32.totalorder %s17, 1
      %p78 = por %p76, %p77
      %p80 = scmp.ne.s32.totalorder %s63, %s79
      %p81 = scmp.eq.s32.totalorder %s17, 0
      %p82 = por %p80, %p81
      %s83 = ssub.s32 %s18, %s30
      %s84 = ssub.s32 %s19, %s26
      %s85 = sor.u32 %s83, %s84
      %p86 = scmp.eq.s32.totalorder %s85, 0
      %s88 = sadd.s32 %s87, 1
      %s89 = scalar_select %p86, %s87, %s88
      %p92 = pneg %p86
      %p93 = scmp.eq.s32.totalorder %s11, 1
      %p94 = por %p92, %p93
      %p95 = scmp.ne.s32.totalorder %s87, %s90
      %p96 = scmp.eq.s32.totalorder %s11, 0
      %p97 = por %p95, %p96
      %p98 = scmp.ne.s32.totalorder %s87, %s90
      %p99 = scmp.eq.s32.totalorder %s16, 1
      %p100 = por %p98, %p99
      %p101 = scmp.ne.s32.totalorder %s90, %s91
      %p102 = scmp.eq.s32.totalorder %s16, 0
      %p103 = por %p101, %p102
      %p104 = scmp.ne.s32.totalorder %s90, %s91
      %p105 = scmp.eq.s32.totalorder %s17, 1
      %p106 = por %p104, %p105
      %p108 = scmp.ne.s32.totalorder %s91, %s107
      %p109 = scmp.eq.s32.totalorder %s17, 0
      %p110 = por %p108, %p109
      %p111 = scmp.le.s32.totalorder 1, %s11
      %p112 = scmp.lt.s32.totalorder %s11, 3
      %p113 = pnand %p111, %p112
      %p114 = pneg %p113
      // Predicated region
      $region9: #{tpu_custom_call.1} parent=5 // pred_check
        _
      $region10: #{tpu_custom_call.1} parent=5 // pred_check_branch
        %116 = sbr.rel (%p113) target = $region12
      $region11: #{tpu_custom_call.1} parent=5 // pred_region
        %s117 = ssub.s32 %s11, 1
        // Predicated region
        $region13: #{tpu_custom_call.1} parent=11 // pred_check
          %p118 = pneg %p49
        $region14: #{tpu_custom_call.1} parent=11 // pred_check_branch
          %120 = sbr.rel (%p118) target = $region16
        $region15: #{tpu_custom_call.1} parent=11 // pred_region
          %s121 = smul.u32 32, %s20
          %p122 = scmp.lt.s32.totalorder %s121, 31
          %s123 = scalar_select %p122, %s121, 31
          %s124 = smul.addr %s123, 8
          %s125 = scalar_lea.vmem %s0, %s124
          %s126 = smul.u32 32, %s20
        $region16: #{tpu_custom_call.1} parent=11 // pred_fallthru
          _
      $region12: #{tpu_custom_call.1} parent=5 // pred_fallthru
        _
      %p127 = scmp.lt.s32.totalorder %s11, 2
      // Predicated region
      $region17: #{tpu_custom_call.1} parent=5 // pred_check
        %p128 = pneg %p127
      $region18: #{tpu_custom_call.1} parent=5 // pred_check_branch
        %130 = sbr.rel (%p128) target = $region20
      $region19: #{tpu_custom_call.1} parent=5 // pred_region
        // Predicated region
        $region21: #{tpu_custom_call.1} parent=19 // pred_check
          %p131 = pneg %p69
        $region22: #{tpu_custom_call.1} parent=19 // pred_check_branch
          %133 = sbr.rel (%p131) target = $region24
        $region23: #{tpu_custom_call.1} parent=19 // pred_region
          %p134 = scmp.lt.s32.totalorder %s19, 1
          %s135 = scalar_select %p134, %s19, 1
          %s136 = smul.addr %s135, 8
          %s137 = scalar_lea.vmem %s1, %s136
        $region24: #{tpu_custom_call.1} parent=19 // pred_fallthru
          _
      $region20: #{tpu_custom_call.1} parent=5 // pred_fallthru
        _
      %p138 = scmp.le.s32.totalorder 1, %s11
      %p139 = scmp.lt.s32.totalorder %s11, 3
      %p140 = pnand %p138, %p139
      %p141 = pneg %p140
      // Predicated region
      $region25: #{tpu_custom_call.1} parent=5 // pred_check
        _
      $region26: #{tpu_custom_call.1} parent=5 // pred_check_branch
        %143 = sbr.rel (%p140) target = $region28
      $region27: #{tpu_custom_call.1} parent=5 // pred_region
        %s144 = ssub.s32 %s11, 1
        %s145 = smul.u32 32, %s20
        %p146 = scmp.lt.s32.totalorder %s145, 31
        %s147 = scalar_select %p146, %s145, 31
        %s148 = smul.addr %s147, 8
        %s149 = scalar_lea.vmem %s0, %s148
        %p150 = pneg %p49
        %p151 = pneg %p46
        %p152 = scmp.lt.s32.totalorder %s21, 1
        %s153 = scalar_select %p152, %s21, 1
        %s154 = smul.addr %s153, 8
        %s155 = scalar_lea.vmem %s1, %s154
        %p156 = pneg %p75
        %p157 = pneg %p72
        %p158 = pneg %p103
        %p159 = pneg %p100
        %s160 = sand.u32 %s90, 1
        %s161 = scalar_lea.sflag [#allocation3], %s160
        %s162 = sand.u32 %s90, 1
        %s163 = smul.addr %s162, 256
        %s164 = scalar_lea.vmem [#allocation2], %s163
        %s165 = smul.u32 32, %s20
        %p166 = scmp.lt.s32.totalorder %s165, 31
        %s167 = scalar_select %p166, %s165, 31
        %s168 = smul.addr %s167, 8
        %s169 = scalar_lea.vmem %s0, %s168
        %s170 = smul.u32 32, %s20
        %p171 = scmp.lt.s32.totalorder %s21, 1
        %s172 = scalar_select %p171, %s21, 1
        %s173 = smul.addr %s172, 8
        %s174 = scalar_lea.vmem %s1, %s173
        %s175 = smul.u32 32, %s20
        %v176 = vld [vmem:[%s169] sm:$0xff]
        %v177 = vld [vmem:[%s169 + $0x8] sm:$0xff]
        %v178 = vld [vmem:[%s169 + $0x10] sm:$0xff]
        %v179 = vld [vmem:[%s169 + $0x18] sm:$0xff]
        %v180 = vld [vmem:[%s169 + $0x20] sm:$0xff]
        %v181 = vld [vmem:[%s169 + $0x28] sm:$0xff]
        %v182 = vld [vmem:[%s169 + $0x30] sm:$0xff]
        %v183 = vld [vmem:[%s169 + $0x38] sm:$0xff]
        %v184 = vld [vmem:[%s169 + $0x40] sm:$0xff]
        %v185 = vld [vmem:[%s169 + $0x48] sm:$0xff]
        %v186 = vld [vmem:[%s169 + $0x50] sm:$0xff]
        %v187 = vld [vmem:[%s169 + $0x58] sm:$0xff]
        %v188 = vld [vmem:[%s169 + $0x60] sm:$0xff]
        %v189 = vld [vmem:[%s169 + $0x68] sm:$0xff]
        %v190 = vld [vmem:[%s169 + $0x70] sm:$0xff]
        %v191 = vld [vmem:[%s169 + $0x78] sm:$0xff]
        %v192 = vld [vmem:[%s169 + $0x80] sm:$0xff]
        %v193 = vld [vmem:[%s169 + $0x88] sm:$0xff]
        %v194 = vld [vmem:[%s169 + $0x90] sm:$0xff]
        %v195 = vld [vmem:[%s169 + $0x98] sm:$0xff]
        %v196 = vld [vmem:[%s169 + $0xa0] sm:$0xff]
        %v197 = vld [vmem:[%s169 + $0xa8] sm:$0xff]
        %v198 = vld [vmem:[%s169 + $0xb0] sm:$0xff]
        %v199 = vld [vmem:[%s169 + $0xb8] sm:$0xff]
        %v200 = vld [vmem:[%s169 + $0xc0] sm:$0xff]
        %v201 = vld [vmem:[%s169 + $0xc8] sm:$0xff]
        %v202 = vld [vmem:[%s169 + $0xd0] sm:$0xff]
        %v203 = vld [vmem:[%s169 + $0xd8] sm:$0xff]
        %v204 = vld [vmem:[%s169 + $0xe0] sm:$0xff]
        %v205 = vld [vmem:[%s169 + $0xe8] sm:$0xff]
        %v206 = vld [vmem:[%s169 + $0xf0] sm:$0xff]
        %v207 = vld [vmem:[%s169 + $0xf8] sm:$0xff]
        %v208 = vld [vmem:[%s174] sm:$0xff]
        %210 = vset.pattern.permute.xlu0 0
        %211 = vperm.xlu0 %210, %v176
        %v212 = vpop.permute.xlu0 %211
        %215 = vset.pattern.permute.xlu0 0
        %216 = vperm.xlu0 %215, %v177
        %v217 = vpop.permute.xlu0 %216
        %220 = vset.pattern.permute.xlu0 0
        %221 = vperm.xlu0 %220, %v178
        %v222 = vpop.permute.xlu0 %221
        %225 = vset.pattern.permute.xlu0 0
        %226 = vperm.xlu0 %225, %v179
        %v227 = vpop.permute.xlu0 %226
        %230 = vset.pattern.permute.xlu0 0
        %231 = vperm.xlu0 %230, %v180
        %v232 = vpop.permute.xlu0 %231
        %235 = vset.pattern.permute.xlu0 0
        %236 = vperm.xlu0 %235, %v181
        %v237 = vpop.permute.xlu0 %236
        %240 = vset.pattern.permute.xlu0 0
        %241 = vperm.xlu0 %240, %v182
        %v242 = vpop.permute.xlu0 %241
        %245 = vset.pattern.permute.xlu0 0
        %246 = vperm.xlu0 %245, %v183
        %v247 = vpop.permute.xlu0 %246
        %250 = vset.pattern.permute.xlu0 0
        %251 = vperm.xlu0 %250, %v184
        %v252 = vpop.permute.xlu0 %251
        %255 = vset.pattern.permute.xlu0 0
        %256 = vperm.xlu0 %255, %v185
        %v257 = vpop.permute.xlu0 %256
        %260 = vset.pattern.permute.xlu0 0
        %261 = vperm.xlu0 %260, %v186
        %v262 = vpop.permute.xlu0 %261
        %265 = vset.pattern.permute.xlu0 0
        %266 = vperm.xlu0 %265, %v187
        %v267 = vpop.permute.xlu0 %266
        %270 = vset.pattern.permute.xlu0 0
        %271 = vperm.xlu0 %270, %v188
        %v272 = vpop.permute.xlu0 %271
        %275 = vset.pattern.permute.xlu0 0
        %276 = vperm.xlu0 %275, %v189
        %v277 = vpop.permute.xlu0 %276
        %280 = vset.pattern.permute.xlu0 0
        %281 = vperm.xlu0 %280, %v190
        %v282 = vpop.permute.xlu0 %281
        %285 = vset.pattern.permute.xlu0 0
        %286 = vperm.xlu0 %285, %v191
        %v287 = vpop.permute.xlu0 %286
        %290 = vset.pattern.permute.xlu0 0
        %291 = vperm.xlu0 %290, %v192
        %v292 = vpop.permute.xlu0 %291
        %295 = vset.pattern.permute.xlu0 0
        %296 = vperm.xlu0 %295, %v193
        %v297 = vpop.permute.xlu0 %296
        %300 = vset.pattern.permute.xlu0 0
        %301 = vperm.xlu0 %300, %v194
        %v302 = vpop.permute.xlu0 %301
        %305 = vset.pattern.permute.xlu0 0
        %306 = vperm.xlu0 %305, %v195
        %v307 = vpop.permute.xlu0 %306
        %310 = vset.pattern.permute.xlu0 0
        %311 = vperm.xlu0 %310, %v196
        %v312 = vpop.permute.xlu0 %311
        %315 = vset.pattern.permute.xlu0 0
        %316 = vperm.xlu0 %315, %v197
        %v317 = vpop.permute.xlu0 %316
        %320 = vset.pattern.permute.xlu0 0
        %321 = vperm.xlu0 %320, %v198
        %v322 = vpop.permute.xlu0 %321
        %325 = vset.pattern.permute.xlu0 0
        %326 = vperm.xlu0 %325, %v199
        %v327 = vpop.permute.xlu0 %326
        %330 = vset.pattern.permute.xlu0 0
        %331 = vperm.xlu0 %330, %v200
        %v332 = vpop.permute.xlu0 %331
        %335 = vset.pattern.permute.xlu0 0
        %336 = vperm.xlu0 %335, %v201
        %v337 = vpop.permute.xlu0 %336
        %340 = vset.pattern.permute.xlu0 0
        %341 = vperm.xlu0 %340, %v202
        %v342 = vpop.permute.xlu0 %341
        %345 = vset.pattern.permute.xlu0 0
        %346 = vperm.xlu0 %345, %v203
        %v347 = vpop.permute.xlu0 %346
        %350 = vset.pattern.permute.xlu0 0
        %351 = vperm.xlu0 %350, %v204
        %v352 = vpop.permute.xlu0 %351
        %355 = vset.pattern.permute.xlu0 0
        %356 = vperm.xlu0 %355, %v205
        %v357 = vpop.permute.xlu0 %356
        %360 = vset.pattern.permute.xlu0 0
        %361 = vperm.xlu0 %360, %v206
        %v362 = vpop.permute.xlu0 %361
        %365 = vset.pattern.permute.xlu0 0
        %366 = vperm.xlu0 %365, %v207
        %v367 = vpop.permute.xlu0 %366
        %v369 = vlaneseq
        %v370 = vshrl.u32 %v369, 7
        %v371 = vsub.s32 0, %v370
        %v372 = vrot.slane %v208, %v371
        %v373 = vsub.f32 %v212, %v372
        %v374 = vsub.f32 %v217, %v372
        %v375 = vsub.f32 %v222, %v372
        %v376 = vsub.f32 %v227, %v372
        %v377 = vsub.f32 %v232, %v372
        %v378 = vsub.f32 %v237, %v372
        %v379 = vsub.f32 %v242, %v372
        %v380 = vsub.f32 %v247, %v372
        %v381 = vsub.f32 %v252, %v372
        %v382 = vsub.f32 %v257, %v372
        %v383 = vsub.f32 %v262, %v372
        %v384 = vsub.f32 %v267, %v372
        %v385 = vsub.f32 %v272, %v372
        %v386 = vsub.f32 %v277, %v372
        %v387 = vsub.f32 %v282, %v372
        %v388 = vsub.f32 %v287, %v372
        %v389 = vsub.f32 %v292, %v372
        %v390 = vsub.f32 %v297, %v372
        %v391 = vsub.f32 %v302, %v372
        %v392 = vsub.f32 %v307, %v372
        %v393 = vsub.f32 %v312, %v372
        %v394 = vsub.f32 %v317, %v372
        %v395 = vsub.f32 %v322, %v372
        %v396 = vsub.f32 %v327, %v372
        %v397 = vsub.f32 %v332, %v372
        %v398 = vsub.f32 %v337, %v372
        %v399 = vsub.f32 %v342, %v372
        %v400 = vsub.f32 %v347, %v372
        %v401 = vsub.f32 %v352, %v372
        %v402 = vsub.f32 %v357, %v372
        %v403 = vsub.f32 %v362, %v372
        %v404 = vsub.f32 %v367, %v372
        %v405 = vand.u32 2147483647, %v373
        %v406 = vand.u32 2147483647, %v374
        %v407 = vand.u32 2147483647, %v375
        %v408 = vand.u32 2147483647, %v376
        %v409 = vand.u32 2147483647, %v377
        %v410 = vand.u32 2147483647, %v378
        %v411 = vand.u32 2147483647, %v379
        %v412 = vand.u32 2147483647, %v380
        %v413 = vand.u32 2147483647, %v381
        %v414 = vand.u32 2147483647, %v382
        %v415 = vand.u32 2147483647, %v383
        %v416 = vand.u32 2147483647, %v384
        %v417 = vand.u32 2147483647, %v385
        %v418 = vand.u32 2147483647, %v386
        %v419 = vand.u32 2147483647, %v387
        %v420 = vand.u32 2147483647, %v388
        %v421 = vand.u32 2147483647, %v389
        %v422 = vand.u32 2147483647, %v390
        %v423 = vand.u32 2147483647, %v391
        %v424 = vand.u32 2147483647, %v392
        %v425 = vand.u32 2147483647, %v393
        %v426 = vand.u32 2147483647, %v394
        %v427 = vand.u32 2147483647, %v395
        %v428 = vand.u32 2147483647, %v396
        %v429 = vand.u32 2147483647, %v397
        %v430 = vand.u32 2147483647, %v398
        %v431 = vand.u32 2147483647, %v399
        %v432 = vand.u32 2147483647, %v400
        %v433 = vand.u32 2147483647, %v401
        %v434 = vand.u32 2147483647, %v402
        %v435 = vand.u32 2147483647, %v403
        %v436 = vand.u32 2147483647, %v404
        %437 = vset.pattern.permute.xlu0 1
        %438 = vperm.xlu0 %437, %v176
        %v439 = vpop.permute.xlu0 %438
        %441 = vset.pattern.permute.xlu0 1
        %442 = vperm.xlu0 %441, %v177
        %v443 = vpop.permute.xlu0 %442
        %445 = vset.pattern.permute.xlu0 1
        %446 = vperm.xlu0 %445, %v178
        %v447 = vpop.permute.xlu0 %446
        %449 = vset.pattern.permute.xlu0 1
        %450 = vperm.xlu0 %449, %v179
        %v451 = vpop.permute.xlu0 %450
        %453 = vset.pattern.permute.xlu0 1
        %454 = vperm.xlu0 %453, %v180
        %v455 = vpop.permute.xlu0 %454
        %457 = vset.pattern.permute.xlu0 1
        %458 = vperm.xlu0 %457, %v181
        %v459 = vpop.permute.xlu0 %458
        %461 = vset.pattern.permute.xlu0 1
        %462 = vperm.xlu0 %461, %v182
        %v463 = vpop.permute.xlu0 %462
        %465 = vset.pattern.permute.xlu0 1
        %466 = vperm.xlu0 %465, %v183
        %v467 = vpop.permute.xlu0 %466
        %469 = vset.pattern.permute.xlu0 1
        %470 = vperm.xlu0 %469, %v184
        %v471 = vpop.permute.xlu0 %470
        %473 = vset.pattern.permute.xlu0 1
        %474 = vperm.xlu0 %473, %v185
        %v475 = vpop.permute.xlu0 %474
        %477 = vset.pattern.permute.xlu0 1
        %478 = vperm.xlu0 %477, %v186
        %v479 = vpop.permute.xlu0 %478
        %481 = vset.pattern.permute.xlu0 1
        %482 = vperm.xlu0 %481, %v187
        %v483 = vpop.permute.xlu0 %482
        %485 = vset.pattern.permute.xlu0 1
        %486 = vperm.xlu0 %485, %v188
        %v487 = vpop.permute.xlu0 %486
        %489 = vset.pattern.permute.xlu0 1
        %490 = vperm.xlu0 %489, %v189
        %v491 = vpop.permute.xlu0 %490
        %493 = vset.pattern.permute.xlu0 1
        %494 = vperm.xlu0 %493, %v190
        %v495 = vpop.permute.xlu0 %494
        %497 = vset.pattern.permute.xlu0 1
        %498 = vperm.xlu0 %497, %v191
        %v499 = vpop.permute.xlu0 %498
        %501 = vset.pattern.permute.xlu0 1
        %502 = vperm.xlu0 %501, %v192
        %v503 = vpop.permute.xlu0 %502
        %505 = vset.pattern.permute.xlu0 1
        %506 = vperm.xlu0 %505, %v193
        %v507 = vpop.permute.xlu0 %506
        %509 = vset.pattern.permute.xlu0 1
        %510 = vperm.xlu0 %509, %v194
        %v511 = vpop.permute.xlu0 %510
        %513 = vset.pattern.permute.xlu0 1
        %514 = vperm.xlu0 %513, %v195
        %v515 = vpop.permute.xlu0 %514
        %517 = vset.pattern.permute.xlu0 1
        %518 = vperm.xlu0 %517, %v196
        %v519 = vpop.permute.xlu0 %518
        %521 = vset.pattern.permute.xlu0 1
        %522 = vperm.xlu0 %521, %v197
        %v523 = vpop.permute.xlu0 %522
        %525 = vset.pattern.permute.xlu0 1
        %526 = vperm.xlu0 %525, %v198
        %v527 = vpop.permute.xlu0 %526
        %529 = vset.pattern.permute.xlu0 1
        %530 = vperm.xlu0 %529, %v199
        %v531 = vpop.permute.xlu0 %530
        %533 = vset.pattern.permute.xlu0 1
        %534 = vperm.xlu0 %533, %v200
        %v535 = vpop.permute.xlu0 %534
        %537 = vset.pattern.permute.xlu0 1
        %538 = vperm.xlu0 %537, %v201
        %v539 = vpop.permute.xlu0 %538
        %541 = vset.pattern.permute.xlu0 1
        %542 = vperm.xlu0 %541, %v202
        %v543 = vpop.permute.xlu0 %542
        %545 = vset.pattern.permute.xlu0 1
        %546 = vperm.xlu0 %545, %v203
        %v547 = vpop.permute.xlu0 %546
        %549 = vset.pattern.permute.xlu0 1
        %550 = vperm.xlu0 %549, %v204
        %v551 = vpop.permute.xlu0 %550
        %553 = vset.pattern.permute.xlu0 1
        %554 = vperm.xlu0 %553, %v205
        %v555 = vpop.permute.xlu0 %554
        %557 = vset.pattern.permute.xlu0 1
        %558 = vperm.xlu0 %557, %v206
        %v559 = vpop.permute.xlu0 %558
        %561 = vset.pattern.permute.xlu0 1
        %562 = vperm.xlu0 %561, %v207
        %v563 = vpop.permute.xlu0 %562
        %v565 = vlaneseq
        %v566 = vshrl.u32 %v565, 7
        %v567 = vsub.s32 1, %v566
        %v568 = vrot.slane %v208, %v567
        %v569 = vsub.f32 %v439, %v568
        %v570 = vsub.f32 %v443, %v568
        %v571 = vsub.f32 %v447, %v568
        %v572 = vsub.f32 %v451, %v568
        %v573 = vsub.f32 %v455, %v568
        %v574 = vsub.f32 %v459, %v568
        %v575 = vsub.f32 %v463, %v568
        %v576 = vsub.f32 %v467, %v568
        %v577 = vsub.f32 %v471, %v568
        %v578 = vsub.f32 %v475, %v568
        %v579 = vsub.f32 %v479, %v568
        %v580 = vsub.f32 %v483, %v568
        %v581 = vsub.f32 %v487, %v568
        %v582 = vsub.f32 %v491, %v568
        %v583 = vsub.f32 %v495, %v568
        %v584 = vsub.f32 %v499, %v568
        %v585 = vsub.f32 %v503, %v568
        %v586 = vsub.f32 %v507, %v568
        %v587 = vsub.f32 %v511, %v568
        %v588 = vsub.f32 %v515, %v568
        %v589 = vsub.f32 %v519, %v568
        %v590 = vsub.f32 %v523, %v568
        %v591 = vsub.f32 %v527, %v568
        %v592 = vsub.f32 %v531, %v568
        %v593 = vsub.f32 %v535, %v568
        %v594 = vsub.f32 %v539, %v568
        %v595 = vsub.f32 %v543, %v568
        %v596 = vsub.f32 %v547, %v568
        %v597 = vsub.f32 %v551, %v568
        %v598 = vsub.f32 %v555, %v568
        %v599 = vsub.f32 %v559, %v568
        %v600 = vsub.f32 %v563, %v568
        %v601 = vand.u32 2147483647, %v569
        %v602 = vand.u32 2147483647, %v570
        %v603 = vand.u32 2147483647, %v571
        %v604 = vand.u32 2147483647, %v572
        %v605 = vand.u32 2147483647, %v573
        %v606 = vand.u32 2147483647, %v574
        %v607 = vand.u32 2147483647, %v575
        %v608 = vand.u32 2147483647, %v576
        %v609 = vand.u32 2147483647, %v577
        %v610 = vand.u32 2147483647, %v578
        %v611 = vand.u32 2147483647, %v579
        %v612 = vand.u32 2147483647, %v580
        %v613 = vand.u32 2147483647, %v581
        %v614 = vand.u32 2147483647, %v582
        %v615 = vand.u32 2147483647, %v583
        %v616 = vand.u32 2147483647, %v584
        %v617 = vand.u32 2147483647, %v585
        %v618 = vand.u32 2147483647, %v586
        %v619 = vand.u32 2147483647, %v587
        %v620 = vand.u32 2147483647, %v588
        %v621 = vand.u32 2147483647, %v589
        %v622 = vand.u32 2147483647, %v590
        %v623 = vand.u32 2147483647, %v591
        %v624 = vand.u32 2147483647, %v592
        %v625 = vand.u32 2147483647, %v593
        %v626 = vand.u32 2147483647, %v594
        %v627 = vand.u32 2147483647, %v595
        %v628 = vand.u32 2147483647, %v596
        %v629 = vand.u32 2147483647, %v597
        %v630 = vand.u32 2147483647, %v598
        %v631 = vand.u32 2147483647, %v599
        %v632 = vand.u32 2147483647, %v600
        %633 = vset.pattern.permute.xlu0 2
        %634 = vperm.xlu0 %633, %v176
        %v635 = vpop.permute.xlu0 %634
        %637 = vset.pattern.permute.xlu0 2
        %638 = vperm.xlu0 %637, %v177
        %v639 = vpop.permute.xlu0 %638
        %641 = vset.pattern.permute.xlu0 2
        %642 = vperm.xlu0 %641, %v178
        %v643 = vpop.permute.xlu0 %642
        %645 = vset.pattern.permute.xlu0 2
        %646 = vperm.xlu0 %645, %v179
        %v647 = vpop.permute.xlu0 %646
        %649 = vset.pattern.permute.xlu0 2
        %650 = vperm.xlu0 %649, %v180
        %v651 = vpop.permute.xlu0 %650
        %653 = vset.pattern.permute.xlu0 2
        %654 = vperm.xlu0 %653, %v181
        %v655 = vpop.permute.xlu0 %654
        %657 = vset.pattern.permute.xlu0 2
        %658 = vperm.xlu0 %657, %v182
        %v659 = vpop.permute.xlu0 %658
        %661 = vset.pattern.permute.xlu0 2
        %662 = vperm.xlu0 %661, %v183
        %v663 = vpop.permute.xlu0 %662
        %665 = vset.pattern.permute.xlu0 2
        %666 = vperm.xlu0 %665, %v184
        %v667 = vpop.permute.xlu0 %666
        %669 = vset.pattern.permute.xlu0 2
        %670 = vperm.xlu0 %669, %v185
        %v671 = vpop.permute.xlu0 %670
        %673 = vset.pattern.permute.xlu0 2
        %674 = vperm.xlu0 %673, %v186
        %v675 = vpop.permute.xlu0 %674
        %677 = vset.pattern.permute.xlu0 2
        %678 = vperm.xlu0 %677, %v187
        %v679 = vpop.permute.xlu0 %678
        %681 = vset.pattern.permute.xlu0 2
        %682 = vperm.xlu0 %681, %v188
        %v683 = vpop.permute.xlu0 %682
        %685 = vset.pattern.permute.xlu0 2
        %686 = vperm.xlu0 %685, %v189
        %v687 = vpop.permute.xlu0 %686
        %689 = vset.pattern.permute.xlu0 2
        %690 = vperm.xlu0 %689, %v190
        %v691 = vpop.permute.xlu0 %690
        %693 = vset.pattern.permute.xlu0 2
        %694 = vperm.xlu0 %693, %v191
        %v695 = vpop.permute.xlu0 %694
        %697 = vset.pattern.permute.xlu0 2
        %698 = vperm.xlu0 %697, %v192
        %v699 = vpop.permute.xlu0 %698
        %701 = vset.pattern.permute.xlu0 2
        %702 = vperm.xlu0 %701, %v193
        %v703 = vpop.permute.xlu0 %702
        %705 = vset.pattern.permute.xlu0 2
        %706 = vperm.xlu0 %705, %v194
        %v707 = vpop.permute.xlu0 %706
        %709 = vset.pattern.permute.xlu0 2
        %710 = vperm.xlu0 %709, %v195
        %v711 = vpop.permute.xlu0 %710
        %713 = vset.pattern.permute.xlu0 2
        %714 = vperm.xlu0 %713, %v196
        %v715 = vpop.permute.xlu0 %714
        %717 = vset.pattern.permute.xlu0 2
        %718 = vperm.xlu0 %717, %v197
        %v719 = vpop.permute.xlu0 %718
        %721 = vset.pattern.permute.xlu0 2
        %722 = vperm.xlu0 %721, %v198
        %v723 = vpop.permute.xlu0 %722
        %725 = vset.pattern.permute.xlu0 2
        %726 = vperm.xlu0 %725, %v199
        %v727 = vpop.permute.xlu0 %726
        %729 = vset.pattern.permute.xlu0 2
        %730 = vperm.xlu0 %729, %v200
        %v731 = vpop.permute.xlu0 %730
        %733 = vset.pattern.permute.xlu0 2
        %734 = vperm.xlu0 %733, %v201
        %v735 = vpop.permute.xlu0 %734
        %737 = vset.pattern.permute.xlu0 2
        %738 = vperm.xlu0 %737, %v202
        %v739 = vpop.permute.xlu0 %738
        %741 = vset.pattern.permute.xlu0 2
        %742 = vperm.xlu0 %741, %v203
        %v743 = vpop.permute.xlu0 %742
        %745 = vset.pattern.permute.xlu0 2
        %746 = vperm.xlu0 %745, %v204
        %v747 = vpop.permute.xlu0 %746
        %749 = vset.pattern.permute.xlu0 2
        %750 = vperm.xlu0 %749, %v205
        %v751 = vpop.permute.xlu0 %750
        %753 = vset.pattern.permute.xlu0 2
        %754 = vperm.xlu0 %753, %v206
        %v755 = vpop.permute.xlu0 %754
        %757 = vset.pattern.permute.xlu0 2
        %758 = vperm.xlu0 %757, %v207
        %v759 = vpop.permute.xlu0 %758
        %v761 = vlaneseq
        %v762 = vshrl.u32 %v761, 7
        %v763 = vsub.s32 2, %v762
        %v764 = vrot.slane %v208, %v763
        %v765 = vsub.f32 %v635, %v764
        %v766 = vsub.f32 %v639, %v764
        %v767 = vsub.f32 %v643, %v764
        %v768 = vsub.f32 %v647, %v764
        %v769 = vsub.f32 %v651, %v764
        %v770 = vsub.f32 %v655, %v764
        %v771 = vsub.f32 %v659, %v764
        %v772 = vsub.f32 %v663, %v764
        %v773 = vsub.f32 %v667, %v764
        %v774 = vsub.f32 %v671, %v764
        %v775 = vsub.f32 %v675, %v764
        %v776 = vsub.f32 %v679, %v764
        %v777 = vsub.f32 %v683, %v764
        %v778 = vsub.f32 %v687, %v764
        %v779 = vsub.f32 %v691, %v764
        %v780 = vsub.f32 %v695, %v764
        %v781 = vsub.f32 %v699, %v764
        %v782 = vsub.f32 %v703, %v764
        %v783 = vsub.f32 %v707, %v764
        %v784 = vsub.f32 %v711, %v764
        %v785 = vsub.f32 %v715, %v764
        %v786 = vsub.f32 %v719, %v764
        %v787 = vsub.f32 %v723, %v764
        %v788 = vsub.f32 %v727, %v764
        %v789 = vsub.f32 %v731, %v764
        %v790 = vsub.f32 %v735, %v764
        %v791 = vsub.f32 %v739, %v764
        %v792 = vsub.f32 %v743, %v764
        %v793 = vsub.f32 %v747, %v764
        %v794 = vsub.f32 %v751, %v764
        %v795 = vsub.f32 %v755, %v764
        %v796 = vsub.f32 %v759, %v764
        %v797 = vand.u32 2147483647, %v765
        %v798 = vand.u32 2147483647, %v766
        %v799 = vand.u32 2147483647, %v767
        %v800 = vand.u32 2147483647, %v768
        %v801 = vand.u32 2147483647, %v769
        %v802 = vand.u32 2147483647, %v770
        %v803 = vand.u32 2147483647, %v771
        %v804 = vand.u32 2147483647, %v772
        %v805 = vand.u32 2147483647, %v773
        %v806 = vand.u32 2147483647, %v774
        %v807 = vand.u32 2147483647, %v775
        %v808 = vand.u32 2147483647, %v776
        %v809 = vand.u32 2147483647, %v777
        %v810 = vand.u32 2147483647, %v778
        %v811 = vand.u32 2147483647, %v779
        %v812 = vand.u32 2147483647, %v780
        %v813 = vand.u32 2147483647, %v781
        %v814 = vand.u32 2147483647, %v782
        %v815 = vand.u32 2147483647, %v783
        %v816 = vand.u32 2147483647, %v784
        %v817 = vand.u32 2147483647, %v785
        %v818 = vand.u32 2147483647, %v786
        %v819 = vand.u32 2147483647, %v787
        %v820 = vand.u32 2147483647, %v788
        %v821 = vand.u32 2147483647, %v789
        %v822 = vand.u32 2147483647, %v790
        %v823 = vand.u32 2147483647, %v791
        %v824 = vand.u32 2147483647, %v792
        %v825 = vand.u32 2147483647, %v793
        %v826 = vand.u32 2147483647, %v794
        %v827 = vand.u32 2147483647, %v795
        %v828 = vand.u32 2147483647, %v796
        %v829 = vadd.f32 %v601, %v797
        %v830 = vadd.f32 %v602, %v798
        %v831 = vadd.f32 %v603, %v799
        %v832 = vadd.f32 %v604, %v800
        %v833 = vadd.f32 %v605, %v801
        %v834 = vadd.f32 %v606, %v802
        %v835 = vadd.f32 %v607, %v803
        %v836 = vadd.f32 %v608, %v804
        %v837 = vadd.f32 %v609, %v805
        %v838 = vadd.f32 %v610, %v806
        %v839 = vadd.f32 %v611, %v807
        %v840 = vadd.f32 %v612, %v808
        %v841 = vadd.f32 %v613, %v809
        %v842 = vadd.f32 %v614, %v810
        %v843 = vadd.f32 %v615, %v811
        %v844 = vadd.f32 %v616, %v812
        %v845 = vadd.f32 %v617, %v813
        %v846 = vadd.f32 %v618, %v814
        %v847 = vadd.f32 %v619, %v815
        %v848 = vadd.f32 %v620, %v816
        %v849 = vadd.f32 %v621, %v817
        %v850 = vadd.f32 %v622, %v818
        %v851 = vadd.f32 %v623, %v819
        %v852 = vadd.f32 %v624, %v820
        %v853 = vadd.f32 %v625, %v821
        %v854 = vadd.f32 %v626, %v822
        %v855 = vadd.f32 %v627, %v823
        %v856 = vadd.f32 %v628, %v824
        %v857 = vadd.f32 %v629, %v825
        %v858 = vadd.f32 %v630, %v826
        %v859 = vadd.f32 %v631, %v827
        %v860 = vadd.f32 %v632, %v828
        %861 = vset.pattern.permute.xlu0 3
        %862 = vperm.xlu0 %861, %v176
        %v863 = vpop.permute.xlu0 %862
        %865 = vset.pattern.permute.xlu0 3
        %866 = vperm.xlu0 %865, %v177
        %v867 = vpop.permute.xlu0 %866
        %869 = vset.pattern.permute.xlu0 3
        %870 = vperm.xlu0 %869, %v178
        %v871 = vpop.permute.xlu0 %870
        %873 = vset.pattern.permute.xlu0 3
        %874 = vperm.xlu0 %873, %v179
        %v875 = vpop.permute.xlu0 %874
        %877 = vset.pattern.permute.xlu0 3
        %878 = vperm.xlu0 %877, %v180
        %v879 = vpop.permute.xlu0 %878
        %881 = vset.pattern.permute.xlu0 3
        %882 = vperm.xlu0 %881, %v181
        %v883 = vpop.permute.xlu0 %882
        %885 = vset.pattern.permute.xlu0 3
        %886 = vperm.xlu0 %885, %v182
        %v887 = vpop.permute.xlu0 %886
        %889 = vset.pattern.permute.xlu0 3
        %890 = vperm.xlu0 %889, %v183
        %v891 = vpop.permute.xlu0 %890
        %893 = vset.pattern.permute.xlu0 3
        %894 = vperm.xlu0 %893, %v184
        %v895 = vpop.permute.xlu0 %894
        %897 = vset.pattern.permute.xlu0 3
        %898 = vperm.xlu0 %897, %v185
        %v899 = vpop.permute.xlu0 %898
        %901 = vset.pattern.permute.xlu0 3
        %902 = vperm.xlu0 %901, %v186
        %v903 = vpop.permute.xlu0 %902
        %905 = vset.pattern.permute.xlu0 3
        %906 = vperm.xlu0 %905, %v187
        %v907 = vpop.permute.xlu0 %906
        %909 = vset.pattern.permute.xlu0 3
        %910 = vperm.xlu0 %909, %v188
        %v911 = vpop.permute.xlu0 %910
        %913 = vset.pattern.permute.xlu0 3
        %914 = vperm.xlu0 %913, %v189
        %v915 = vpop.permute.xlu0 %914
        %917 = vset.pattern.permute.xlu0 3
        %918 = vperm.xlu0 %917, %v190
        %v919 = vpop.permute.xlu0 %918
        %921 = vset.pattern.permute.xlu0 3
        %922 = vperm.xlu0 %921, %v191
        %v923 = vpop.permute.xlu0 %922
        %925 = vset.pattern.permute.xlu0 3
        %926 = vperm.xlu0 %925, %v192
        %v927 = vpop.permute.xlu0 %926
        %929 = vset.pattern.permute.xlu0 3
        %930 = vperm.xlu0 %929, %v193
        %v931 = vpop.permute.xlu0 %930
        %933 = vset.pattern.permute.xlu0 3
        %934 = vperm.xlu0 %933, %v194
        %v935 = vpop.permute.xlu0 %934
        %937 = vset.pattern.permute.xlu0 3
        %938 = vperm.xlu0 %937, %v195
        %v939 = vpop.permute.xlu0 %938
        %941 = vset.pattern.permute.xlu0 3
        %942 = vperm.xlu0 %941, %v196
        %v943 = vpop.permute.xlu0 %942
        %945 = vset.pattern.permute.xlu0 3
        %946 = vperm.xlu0 %945, %v197
        %v947 = vpop.permute.xlu0 %946
        %949 = vset.pattern.permute.xlu0 3
        %950 = vperm.xlu0 %949, %v198
        %v951 = vpop.permute.xlu0 %950
        %953 = vset.pattern.permute.xlu0 3
        %954 = vperm.xlu0 %953, %v199
        %v955 = vpop.permute.xlu0 %954
        %957 = vset.pattern.permute.xlu0 3
        %958 = vperm.xlu0 %957, %v200
        %v959 = vpop.permute.xlu0 %958
        %961 = vset.pattern.permute.xlu0 3
        %962 = vperm.xlu0 %961, %v201
        %v963 = vpop.permute.xlu0 %962
        %965 = vset.pattern.permute.xlu0 3
        %966 = vperm.xlu0 %965, %v202
        %v967 = vpop.permute.xlu0 %966
        %969 = vset.pattern.permute.xlu0 3
        %970 = vperm.xlu0 %969, %v203
        %v971 = vpop.permute.xlu0 %970
        %973 = vset.pattern.permute.xlu0 3
        %974 = vperm.xlu0 %973, %v204
        %v975 = vpop.permute.xlu0 %974
        %977 = vset.pattern.permute.xlu0 3
        %978 = vperm.xlu0 %977, %v205
        %v979 = vpop.permute.xlu0 %978
        %981 = vset.pattern.permute.xlu0 3
        %982 = vperm.xlu0 %981, %v206
        %v983 = vpop.permute.xlu0 %982
        %985 = vset.pattern.permute.xlu0 3
        %986 = vperm.xlu0 %985, %v207
        %v987 = vpop.permute.xlu0 %986
        %v989 = vlaneseq
        %v990 = vshrl.u32 %v989, 7
        %v991 = vsub.s32 3, %v990
        %v992 = vrot.slane %v208, %v991
        %v993 = vsub.f32 %v863, %v992
        %v994 = vsub.f32 %v867, %v992
        %v995 = vsub.f32 %v871, %v992
        %v996 = vsub.f32 %v875, %v992
        %v997 = vsub.f32 %v879, %v992
        %v998 = vsub.f32 %v883, %v992
        %v999 = vsub.f32 %v887, %v992
        %v1000 = vsub.f32 %v891, %v992
        %v1001 = vsub.f32 %v895, %v992
        %v1002 = vsub.f32 %v899, %v992
        %v1003 = vsub.f32 %v903, %v992
        %v1004 = vsub.f32 %v907, %v992
        %v1005 = vsub.f32 %v911, %v992
        %v1006 = vsub.f32 %v915, %v992
        %v1007 = vsub.f32 %v919, %v992
        %v1008 = vsub.f32 %v923, %v992
        %v1009 = vsub.f32 %v927, %v992
        %v1010 = vsub.f32 %v931, %v992
        %v1011 = vsub.f32 %v935, %v992
        %v1012 = vsub.f32 %v939, %v992
        %v1013 = vsub.f32 %v943, %v992
        %v1014 = vsub.f32 %v947, %v992
        %v1015 = vsub.f32 %v951, %v992
        %v1016 = vsub.f32 %v955, %v992
        %v1017 = vsub.f32 %v959, %v992
        %v1018 = vsub.f32 %v963, %v992
        %v1019 = vsub.f32 %v967, %v992
        %v1020 = vsub.f32 %v971, %v992
        %v1021 = vsub.f32 %v975, %v992
        %v1022 = vsub.f32 %v979, %v992
        %v1023 = vsub.f32 %v983, %v992
        %v1024 = vsub.f32 %v987, %v992
        %v1025 = vand.u32 2147483647, %v993
        %v1026 = vand.u32 2147483647, %v994
        %v1027 = vand.u32 2147483647, %v995
        %v1028 = vand.u32 2147483647, %v996
        %v1029 = vand.u32 2147483647, %v997
        %v1030 = vand.u32 2147483647, %v998
        %v1031 = vand.u32 2147483647, %v999
        %v1032 = vand.u32 2147483647, %v1000
        %v1033 = vand.u32 2147483647, %v1001
        %v1034 = vand.u32 2147483647, %v1002
        %v1035 = vand.u32 2147483647, %v1003
        %v1036 = vand.u32 2147483647, %v1004
        %v1037 = vand.u32 2147483647, %v1005
        %v1038 = vand.u32 2147483647, %v1006
        %v1039 = vand.u32 2147483647, %v1007
        %v1040 = vand.u32 2147483647, %v1008
        %v1041 = vand.u32 2147483647, %v1009
        %v1042 = vand.u32 2147483647, %v1010
        %v1043 = vand.u32 2147483647, %v1011
        %v1044 = vand.u32 2147483647, %v1012
        %v1045 = vand.u32 2147483647, %v1013
        %v1046 = vand.u32 2147483647, %v1014
        %v1047 = vand.u32 2147483647, %v1015
        %v1048 = vand.u32 2147483647, %v1016
        %v1049 = vand.u32 2147483647, %v1017
        %v1050 = vand.u32 2147483647, %v1018
        %v1051 = vand.u32 2147483647, %v1019
        %v1052 = vand.u32 2147483647, %v1020
        %v1053 = vand.u32 2147483647, %v1021
        %v1054 = vand.u32 2147483647, %v1022
        %v1055 = vand.u32 2147483647, %v1023
        %v1056 = vand.u32 2147483647, %v1024
        %v1057 = vadd.f32 %v829, %v1025
        %v1058 = vadd.f32 %v830, %v1026
        %v1059 = vadd.f32 %v831, %v1027
        %v1060 = vadd.f32 %v832, %v1028
        %v1061 = vadd.f32 %v833, %v1029
        %v1062 = vadd.f32 %v834, %v1030
        %v1063 = vadd.f32 %v835, %v1031
        %v1064 = vadd.f32 %v836, %v1032
        %v1065 = vadd.f32 %v837, %v1033
        %v1066 = vadd.f32 %v838, %v1034
        %v1067 = vadd.f32 %v839, %v1035
        %v1068 = vadd.f32 %v840, %v1036
        %v1069 = vadd.f32 %v841, %v1037
        %v1070 = vadd.f32 %v842, %v1038
        %v1071 = vadd.f32 %v843, %v1039
        %v1072 = vadd.f32 %v844, %v1040
        %v1073 = vadd.f32 %v845, %v1041
        %v1074 = vadd.f32 %v846, %v1042
        %v1075 = vadd.f32 %v847, %v1043
        %v1076 = vadd.f32 %v848, %v1044
        %v1077 = vadd.f32 %v849, %v1045
        %v1078 = vadd.f32 %v850, %v1046
        %v1079 = vadd.f32 %v851, %v1047
        %v1080 = vadd.f32 %v852, %v1048
        %v1081 = vadd.f32 %v853, %v1049
        %v1082 = vadd.f32 %v854, %v1050
        %v1083 = vadd.f32 %v855, %v1051
        %v1084 = vadd.f32 %v856, %v1052
        %v1085 = vadd.f32 %v857, %v1053
        %v1086 = vadd.f32 %v858, %v1054
        %v1087 = vadd.f32 %v859, %v1055
        %v1088 = vadd.f32 %v860, %v1056
        %1089 = vset.pattern.permute.xlu0 4
        %1090 = vperm.xlu0 %1089, %v176
        %v1091 = vpop.permute.xlu0 %1090
        %1093 = vset.pattern.permute.xlu0 4
        %1094 = vperm.xlu0 %1093, %v177
        %v1095 = vpop.permute.xlu0 %1094
        %1097 = vset.pattern.permute.xlu0 4
        %1098 = vperm.xlu0 %1097, %v178
        %v1099 = vpop.permute.xlu0 %1098
        %1101 = vset.pattern.permute.xlu0 4
        %1102 = vperm.xlu0 %1101, %v179
        %v1103 = vpop.permute.xlu0 %1102
        %1105 = vset.pattern.permute.xlu0 4
        %1106 = vperm.xlu0 %1105, %v180
        %v1107 = vpop.permute.xlu0 %1106
        %1109 = vset.pattern.permute.xlu0 4
        %1110 = vperm.xlu0 %1109, %v181
        %v1111 = vpop.permute.xlu0 %1110
        %1113 = vset.pattern.permute.xlu0 4
        %1114 = vperm.xlu0 %1113, %v182
        %v1115 = vpop.permute.xlu0 %1114
        %1117 = vset.pattern.permute.xlu0 4
        %1118 = vperm.xlu0 %1117, %v183
        %v1119 = vpop.permute.xlu0 %1118
        %1121 = vset.pattern.permute.xlu0 4
        %1122 = vperm.xlu0 %1121, %v184
        %v1123 = vpop.permute.xlu0 %1122
        %1125 = vset.pattern.permute.xlu0 4
        %1126 = vperm.xlu0 %1125, %v185
        %v1127 = vpop.permute.xlu0 %1126
        %1129 = vset.pattern.permute.xlu0 4
        %1130 = vperm.xlu0 %1129, %v186
        %v1131 = vpop.permute.xlu0 %1130
        %1133 = vset.pattern.permute.xlu0 4
        %1134 = vperm.xlu0 %1133, %v187
        %v1135 = vpop.permute.xlu0 %1134
        %1137 = vset.pattern.permute.xlu0 4
        %1138 = vperm.xlu0 %1137, %v188
        %v1139 = vpop.permute.xlu0 %1138
        %1141 = vset.pattern.permute.xlu0 4
        %1142 = vperm.xlu0 %1141, %v189
        %v1143 = vpop.permute.xlu0 %1142
        %1145 = vset.pattern.permute.xlu0 4
        %1146 = vperm.xlu0 %1145, %v190
        %v1147 = vpop.permute.xlu0 %1146
        %1149 = vset.pattern.permute.xlu0 4
        %1150 = vperm.xlu0 %1149, %v191
        %v1151 = vpop.permute.xlu0 %1150
        %1153 = vset.pattern.permute.xlu0 4
        %1154 = vperm.xlu0 %1153, %v192
        %v1155 = vpop.permute.xlu0 %1154
        %1157 = vset.pattern.permute.xlu0 4
        %1158 = vperm.xlu0 %1157, %v193
        %v1159 = vpop.permute.xlu0 %1158
        %1161 = vset.pattern.permute.xlu0 4
        %1162 = vperm.xlu0 %1161, %v194
        %v1163 = vpop.permute.xlu0 %1162
        %1165 = vset.pattern.permute.xlu0 4
        %1166 = vperm.xlu0 %1165, %v195
        %v1167 = vpop.permute.xlu0 %1166
        %1169 = vset.pattern.permute.xlu0 4
        %1170 = vperm.xlu0 %1169, %v196
        %v1171 = vpop.permute.xlu0 %1170
        %1173 = vset.pattern.permute.xlu0 4
        %1174 = vperm.xlu0 %1173, %v197
        %v1175 = vpop.permute.xlu0 %1174
        %1177 = vset.pattern.permute.xlu0 4
        %1178 = vperm.xlu0 %1177, %v198
        %v1179 = vpop.permute.xlu0 %1178
        %1181 = vset.pattern.permute.xlu0 4
        %1182 = vperm.xlu0 %1181, %v199
        %v1183 = vpop.permute.xlu0 %1182
        %1185 = vset.pattern.permute.xlu0 4
        %1186 = vperm.xlu0 %1185, %v200
        %v1187 = vpop.permute.xlu0 %1186
        %1189 = vset.pattern.permute.xlu0 4
        %1190 = vperm.xlu0 %1189, %v201
        %v1191 = vpop.permute.xlu0 %1190
        %1193 = vset.pattern.permute.xlu0 4
        %1194 = vperm.xlu0 %1193, %v202
        %v1195 = vpop.permute.xlu0 %1194
        %1197 = vset.pattern.permute.xlu0 4
        %1198 = vperm.xlu0 %1197, %v203
        %v1199 = vpop.permute.xlu0 %1198
        %1201 = vset.pattern.permute.xlu0 4
        %1202 = vperm.xlu0 %1201, %v204
        %v1203 = vpop.permute.xlu0 %1202
        %1205 = vset.pattern.permute.xlu0 4
        %1206 = vperm.xlu0 %1205, %v205
        %v1207 = vpop.permute.xlu0 %1206
        %1209 = vset.pattern.permute.xlu0 4
        %1210 = vperm.xlu0 %1209, %v206
        %v1211 = vpop.permute.xlu0 %1210
        %1213 = vset.pattern.permute.xlu0 4
        %1214 = vperm.xlu0 %1213, %v207
        %v1215 = vpop.permute.xlu0 %1214
        %v1217 = vlaneseq
        %v1218 = vshrl.u32 %v1217, 7
        %v1219 = vsub.s32 4, %v1218
        %v1220 = vrot.slane %v208, %v1219
        %v1221 = vsub.f32 %v1091, %v1220
        %v1222 = vsub.f32 %v1095, %v1220
        %v1223 = vsub.f32 %v1099, %v1220
        %v1224 = vsub.f32 %v1103, %v1220
        %v1225 = vsub.f32 %v1107, %v1220
        %v1226 = vsub.f32 %v1111, %v1220
        %v1227 = vsub.f32 %v1115, %v1220
        %v1228 = vsub.f32 %v1119, %v1220
        %v1229 = vsub.f32 %v1123, %v1220
        %v1230 = vsub.f32 %v1127, %v1220
        %v1231 = vsub.f32 %v1131, %v1220
        %v1232 = vsub.f32 %v1135, %v1220
        %v1233 = vsub.f32 %v1139, %v1220
        %v1234 = vsub.f32 %v1143, %v1220
        %v1235 = vsub.f32 %v1147, %v1220
        %v1236 = vsub.f32 %v1151, %v1220
        %v1237 = vsub.f32 %v1155, %v1220
        %v1238 = vsub.f32 %v1159, %v1220
        %v1239 = vsub.f32 %v1163, %v1220
        %v1240 = vsub.f32 %v1167, %v1220
        %v1241 = vsub.f32 %v1171, %v1220
        %v1242 = vsub.f32 %v1175, %v1220
        %v1243 = vsub.f32 %v1179, %v1220
        %v1244 = vsub.f32 %v1183, %v1220
        %v1245 = vsub.f32 %v1187, %v1220
        %v1246 = vsub.f32 %v1191, %v1220
        %v1247 = vsub.f32 %v1195, %v1220
        %v1248 = vsub.f32 %v1199, %v1220
        %v1249 = vsub.f32 %v1203, %v1220
        %v1250 = vsub.f32 %v1207, %v1220
        %v1251 = vsub.f32 %v1211, %v1220
        %v1252 = vsub.f32 %v1215, %v1220
        %v1253 = vand.u32 2147483647, %v1221
        %v1254 = vand.u32 2147483647, %v1222
        %v1255 = vand.u32 2147483647, %v1223
        %v1256 = vand.u32 2147483647, %v1224
        %v1257 = vand.u32 2147483647, %v1225
        %v1258 = vand.u32 2147483647, %v1226
        %v1259 = vand.u32 2147483647, %v1227
        %v1260 = vand.u32 2147483647, %v1228
        %v1261 = vand.u32 2147483647, %v1229
        %v1262 = vand.u32 2147483647, %v1230
        %v1263 = vand.u32 2147483647, %v1231
        %v1264 = vand.u32 2147483647, %v1232
        %v1265 = vand.u32 2147483647, %v1233
        %v1266 = vand.u32 2147483647, %v1234
        %v1267 = vand.u32 2147483647, %v1235
        %v1268 = vand.u32 2147483647, %v1236
        %v1269 = vand.u32 2147483647, %v1237
        %v1270 = vand.u32 2147483647, %v1238
        %v1271 = vand.u32 2147483647, %v1239
        %v1272 = vand.u32 2147483647, %v1240
        %v1273 = vand.u32 2147483647, %v1241
        %v1274 = vand.u32 2147483647, %v1242
        %v1275 = vand.u32 2147483647, %v1243
        %v1276 = vand.u32 2147483647, %v1244
        %v1277 = vand.u32 2147483647, %v1245
        %v1278 = vand.u32 2147483647, %v1246
        %v1279 = vand.u32 2147483647, %v1247
        %v1280 = vand.u32 2147483647, %v1248
        %v1281 = vand.u32 2147483647, %v1249
        %v1282 = vand.u32 2147483647, %v1250
        %v1283 = vand.u32 2147483647, %v1251
        %v1284 = vand.u32 2147483647, %v1252
        %v1285 = vadd.f32 %v1057, %v1253
        %v1286 = vadd.f32 %v1058, %v1254
        %v1287 = vadd.f32 %v1059, %v1255
        %v1288 = vadd.f32 %v1060, %v1256
        %v1289 = vadd.f32 %v1061, %v1257
        %v1290 = vadd.f32 %v1062, %v1258
        %v1291 = vadd.f32 %v1063, %v1259
        %v1292 = vadd.f32 %v1064, %v1260
        %v1293 = vadd.f32 %v1065, %v1261
        %v1294 = vadd.f32 %v1066, %v1262
        %v1295 = vadd.f32 %v1067, %v1263
        %v1296 = vadd.f32 %v1068, %v1264
        %v1297 = vadd.f32 %v1069, %v1265
        %v1298 = vadd.f32 %v1070, %v1266
        %v1299 = vadd.f32 %v1071, %v1267
        %v1300 = vadd.f32 %v1072, %v1268
        %v1301 = vadd.f32 %v1073, %v1269
        %v1302 = vadd.f32 %v1074, %v1270
        %v1303 = vadd.f32 %v1075, %v1271
        %v1304 = vadd.f32 %v1076, %v1272
        %v1305 = vadd.f32 %v1077, %v1273
        %v1306 = vadd.f32 %v1078, %v1274
        %v1307 = vadd.f32 %v1079, %v1275
        %v1308 = vadd.f32 %v1080, %v1276
        %v1309 = vadd.f32 %v1081, %v1277
        %v1310 = vadd.f32 %v1082, %v1278
        %v1311 = vadd.f32 %v1083, %v1279
        %v1312 = vadd.f32 %v1084, %v1280
        %v1313 = vadd.f32 %v1085, %v1281
        %v1314 = vadd.f32 %v1086, %v1282
        %v1315 = vadd.f32 %v1087, %v1283
        %v1316 = vadd.f32 %v1088, %v1284
        %1317 = vrot.lane.b32.xlu0 %v176, 2
        %v1318 = vpop.permute.xlu0 %1317
        %1319 = vrot.lane.b32.xlu0 %v177, 2
        %v1320 = vpop.permute.xlu0 %1319
        %1321 = vrot.lane.b32.xlu0 %v178, 2
        %v1322 = vpop.permute.xlu0 %1321
        %1323 = vrot.lane.b32.xlu0 %v179, 2
        %v1324 = vpop.permute.xlu0 %1323
        %1325 = vrot.lane.b32.xlu0 %v180, 2
        %v1326 = vpop.permute.xlu0 %1325
        %1327 = vrot.lane.b32.xlu0 %v181, 2
        %v1328 = vpop.permute.xlu0 %1327
        %1329 = vrot.lane.b32.xlu0 %v182, 2
        %v1330 = vpop.permute.xlu0 %1329
        %1331 = vrot.lane.b32.xlu0 %v183, 2
        %v1332 = vpop.permute.xlu0 %1331
        %1333 = vrot.lane.b32.xlu0 %v184, 2
        %v1334 = vpop.permute.xlu0 %1333
        %1335 = vrot.lane.b32.xlu0 %v185, 2
        %v1336 = vpop.permute.xlu0 %1335
        %1337 = vrot.lane.b32.xlu0 %v186, 2
        %v1338 = vpop.permute.xlu0 %1337
        %1339 = vrot.lane.b32.xlu0 %v187, 2
        %v1340 = vpop.permute.xlu0 %1339
        %1341 = vrot.lane.b32.xlu0 %v188, 2
        %v1342 = vpop.permute.xlu0 %1341
        %1343 = vrot.lane.b32.xlu0 %v189, 2
        %v1344 = vpop.permute.xlu0 %1343
        %1345 = vrot.lane.b32.xlu0 %v190, 2
        %v1346 = vpop.permute.xlu0 %1345
        %1347 = vrot.lane.b32.xlu0 %v191, 2
        %v1348 = vpop.permute.xlu0 %1347
        %1349 = vrot.lane.b32.xlu0 %v192, 2
        %v1350 = vpop.permute.xlu0 %1349
        %1351 = vrot.lane.b32.xlu0 %v193, 2
        %v1352 = vpop.permute.xlu0 %1351
        %1353 = vrot.lane.b32.xlu0 %v194, 2
        %v1354 = vpop.permute.xlu0 %1353
        %1355 = vrot.lane.b32.xlu0 %v195, 2
        %v1356 = vpop.permute.xlu0 %1355
        %1357 = vrot.lane.b32.xlu0 %v196, 2
        %v1358 = vpop.permute.xlu0 %1357
        %1359 = vrot.lane.b32.xlu0 %v197, 2
        %v1360 = vpop.permute.xlu0 %1359
        %1361 = vrot.lane.b32.xlu0 %v198, 2
        %v1362 = vpop.permute.xlu0 %1361
        %1363 = vrot.lane.b32.xlu0 %v199, 2
        %v1364 = vpop.permute.xlu0 %1363
        %1365 = vrot.lane.b32.xlu0 %v200, 2
        %v1366 = vpop.permute.xlu0 %1365
        %1367 = vrot.lane.b32.xlu0 %v201, 2
        %v1368 = vpop.permute.xlu0 %1367
        %1369 = vrot.lane.b32.xlu0 %v202, 2
        %v1370 = vpop.permute.xlu0 %1369
        %1371 = vrot.lane.b32.xlu0 %v203, 2
        %v1372 = vpop.permute.xlu0 %1371
        %1373 = vrot.lane.b32.xlu0 %v204, 2
        %v1374 = vpop.permute.xlu0 %1373
        %1375 = vrot.lane.b32.xlu0 %v205, 2
        %v1376 = vpop.permute.xlu0 %1375
        %1377 = vrot.lane.b32.xlu0 %v206, 2
        %v1378 = vpop.permute.xlu0 %1377
        %1379 = vrot.lane.b32.xlu0 %v207, 2
        %v1380 = vpop.permute.xlu0 %1379
        %v1413 = vsub.f32 %v176, %v1318
        %v1414 = vsub.f32 %v177, %v1320
        %v1415 = vsub.f32 %v178, %v1322
        %v1416 = vsub.f32 %v179, %v1324
        %v1417 = vsub.f32 %v180, %v1326
        %v1418 = vsub.f32 %v181, %v1328
        %v1419 = vsub.f32 %v182, %v1330
        %v1420 = vsub.f32 %v183, %v1332
        %v1421 = vsub.f32 %v184, %v1334
        %v1422 = vsub.f32 %v185, %v1336
        %v1423 = vsub.f32 %v186, %v1338
        %v1424 = vsub.f32 %v187, %v1340
        %v1425 = vsub.f32 %v188, %v1342
        %v1426 = vsub.f32 %v189, %v1344
        %v1427 = vsub.f32 %v190, %v1346
        %v1428 = vsub.f32 %v191, %v1348
        %v1429 = vsub.f32 %v192, %v1350
        %v1430 = vsub.f32 %v193, %v1352
        %v1431 = vsub.f32 %v194, %v1354
        %v1432 = vsub.f32 %v195, %v1356
        %v1433 = vsub.f32 %v196, %v1358
        %v1434 = vsub.f32 %v197, %v1360
        %v1435 = vsub.f32 %v198, %v1362
        %v1436 = vsub.f32 %v199, %v1364
        %v1437 = vsub.f32 %v200, %v1366
        %v1438 = vsub.f32 %v201, %v1368
        %v1439 = vsub.f32 %v202, %v1370
        %v1440 = vsub.f32 %v203, %v1372
        %v1441 = vsub.f32 %v204, %v1374
        %v1442 = vsub.f32 %v205, %v1376
        %v1443 = vsub.f32 %v206, %v1378
        %v1444 = vsub.f32 %v207, %v1380
        %1477 = vrot.lane.b32.xlu0 %v1413, 127
        %v1478 = vpop.permute.xlu0 %1477
        %1479 = vrot.lane.b32.xlu0 %v1414, 127
        %v1480 = vpop.permute.xlu0 %1479
        %1481 = vrot.lane.b32.xlu0 %v1415, 127
        %v1482 = vpop.permute.xlu0 %1481
        %1483 = vrot.lane.b32.xlu0 %v1416, 127
        %v1484 = vpop.permute.xlu0 %1483
        %1485 = vrot.lane.b32.xlu0 %v1417, 127
        %v1486 = vpop.permute.xlu0 %1485
        %1487 = vrot.lane.b32.xlu0 %v1418, 127
        %v1488 = vpop.permute.xlu0 %1487
        %1489 = vrot.lane.b32.xlu0 %v1419, 127
        %v1490 = vpop.permute.xlu0 %1489
        %1491 = vrot.lane.b32.xlu0 %v1420, 127
        %v1492 = vpop.permute.xlu0 %1491
        %1493 = vrot.lane.b32.xlu0 %v1421, 127
        %v1494 = vpop.permute.xlu0 %1493
        %1495 = vrot.lane.b32.xlu0 %v1422, 127
        %v1496 = vpop.permute.xlu0 %1495
        %1497 = vrot.lane.b32.xlu0 %v1423, 127
        %v1498 = vpop.permute.xlu0 %1497
        %1499 = vrot.lane.b32.xlu0 %v1424, 127
        %v1500 = vpop.permute.xlu0 %1499
        %1501 = vrot.lane.b32.xlu0 %v1425, 127
        %v1502 = vpop.permute.xlu0 %1501
        %1503 = vrot.lane.b32.xlu0 %v1426, 127
        %v1504 = vpop.permute.xlu0 %1503
        %1505 = vrot.lane.b32.xlu0 %v1427, 127
        %v1506 = vpop.permute.xlu0 %1505
        %1507 = vrot.lane.b32.xlu0 %v1428, 127
        %v1508 = vpop.permute.xlu0 %1507
        %1509 = vrot.lane.b32.xlu0 %v1429, 127
        %v1510 = vpop.permute.xlu0 %1509
        %1511 = vrot.lane.b32.xlu0 %v1430, 127
        %v1512 = vpop.permute.xlu0 %1511
        %1513 = vrot.lane.b32.xlu0 %v1431, 127
        %v1514 = vpop.permute.xlu0 %1513
        %1515 = vrot.lane.b32.xlu0 %v1432, 127
        %v1516 = vpop.permute.xlu0 %1515
        %1517 = vrot.lane.b32.xlu0 %v1433, 127
        %v1518 = vpop.permute.xlu0 %1517
        %1519 = vrot.lane.b32.xlu0 %v1434, 127
        %v1520 = vpop.permute.xlu0 %1519
        %1521 = vrot.lane.b32.xlu0 %v1435, 127
        %v1522 = vpop.permute.xlu0 %1521
        %1523 = vrot.lane.b32.xlu0 %v1436, 127
        %v1524 = vpop.permute.xlu0 %1523
        %1525 = vrot.lane.b32.xlu0 %v1437, 127
        %v1526 = vpop.permute.xlu0 %1525
        %1527 = vrot.lane.b32.xlu0 %v1438, 127
        %v1528 = vpop.permute.xlu0 %1527
        %1529 = vrot.lane.b32.xlu0 %v1439, 127
        %v1530 = vpop.permute.xlu0 %1529
        %1531 = vrot.lane.b32.xlu0 %v1440, 127
        %v1532 = vpop.permute.xlu0 %1531
        %1533 = vrot.lane.b32.xlu0 %v1441, 127
        %v1534 = vpop.permute.xlu0 %1533
        %1535 = vrot.lane.b32.xlu0 %v1442, 127
        %v1536 = vpop.permute.xlu0 %1535
        %1537 = vrot.lane.b32.xlu0 %v1443, 127
        %v1538 = vpop.permute.xlu0 %1537
        %1539 = vrot.lane.b32.xlu0 %v1444, 127
        %v1540 = vpop.permute.xlu0 %1539
        %v1573 = vmul.f32 %v1413, %v1478
        %v1574 = vmul.f32 %v1414, %v1480
        %v1575 = vmul.f32 %v1415, %v1482
        %v1576 = vmul.f32 %v1416, %v1484
        %v1577 = vmul.f32 %v1417, %v1486
        %v1578 = vmul.f32 %v1418, %v1488
        %v1579 = vmul.f32 %v1419, %v1490
        %v1580 = vmul.f32 %v1420, %v1492
        %v1581 = vmul.f32 %v1421, %v1494
        %v1582 = vmul.f32 %v1422, %v1496
        %v1583 = vmul.f32 %v1423, %v1498
        %v1584 = vmul.f32 %v1424, %v1500
        %v1585 = vmul.f32 %v1425, %v1502
        %v1586 = vmul.f32 %v1426, %v1504
        %v1587 = vmul.f32 %v1427, %v1506
        %v1588 = vmul.f32 %v1428, %v1508
        %v1589 = vmul.f32 %v1429, %v1510
        %v1590 = vmul.f32 %v1430, %v1512
        %v1591 = vmul.f32 %v1431, %v1514
        %v1592 = vmul.f32 %v1432, %v1516
        %v1593 = vmul.f32 %v1433, %v1518
        %v1594 = vmul.f32 %v1434, %v1520
        %v1595 = vmul.f32 %v1435, %v1522
        %v1596 = vmul.f32 %v1436, %v1524
        %v1597 = vmul.f32 %v1437, %v1526
        %v1598 = vmul.f32 %v1438, %v1528
        %v1599 = vmul.f32 %v1439, %v1530
        %v1600 = vmul.f32 %v1440, %v1532
        %v1601 = vmul.f32 %v1441, %v1534
        %v1602 = vmul.f32 %v1442, %v1536
        %v1603 = vmul.f32 %v1443, %v1538
        %v1604 = vmul.f32 %v1444, %v1540
        %v1606 = vrot.slane %v208, 6
        %v1608 = vsub.f32 %v208, %v1606
        %v1610 = vrot.slane %v1608, 1
        %v1612 = vmul.f32 %v1608, %v1610
        %v1613 = vmin.f32 %v863, %v992
        %v1614 = vmin.f32 %v867, %v992
        %v1615 = vmin.f32 %v871, %v992
        %v1616 = vmin.f32 %v875, %v992
        %v1617 = vmin.f32 %v879, %v992
        %v1618 = vmin.f32 %v883, %v992
        %v1619 = vmin.f32 %v887, %v992
        %v1620 = vmin.f32 %v891, %v992
        %v1621 = vmin.f32 %v895, %v992
        %v1622 = vmin.f32 %v899, %v992
        %v1623 = vmin.f32 %v903, %v992
        %v1624 = vmin.f32 %v907, %v992
        %v1625 = vmin.f32 %v911, %v992
        %v1626 = vmin.f32 %v915, %v992
        %v1627 = vmin.f32 %v919, %v992
        %v1628 = vmin.f32 %v923, %v992
        %v1629 = vmin.f32 %v927, %v992
        %v1630 = vmin.f32 %v931, %v992
        %v1631 = vmin.f32 %v935, %v992
        %v1632 = vmin.f32 %v939, %v992
        %v1633 = vmin.f32 %v943, %v992
        %v1634 = vmin.f32 %v947, %v992
        %v1635 = vmin.f32 %v951, %v992
        %v1636 = vmin.f32 %v955, %v992
        %v1637 = vmin.f32 %v959, %v992
        %v1638 = vmin.f32 %v963, %v992
        %v1639 = vmin.f32 %v967, %v992
        %v1640 = vmin.f32 %v971, %v992
        %v1641 = vmin.f32 %v975, %v992
        %v1642 = vmin.f32 %v979, %v992
        %v1643 = vmin.f32 %v983, %v992
        %v1644 = vmin.f32 %v987, %v992
        %v1645 = vmax.f32 %v439, %v568
        %v1646 = vmax.f32 %v443, %v568
        %v1647 = vmax.f32 %v447, %v568
        %v1648 = vmax.f32 %v451, %v568
        %v1649 = vmax.f32 %v455, %v568
        %v1650 = vmax.f32 %v459, %v568
        %v1651 = vmax.f32 %v463, %v568
        %v1652 = vmax.f32 %v467, %v568
        %v1653 = vmax.f32 %v471, %v568
        %v1654 = vmax.f32 %v475, %v568
        %v1655 = vmax.f32 %v479, %v568
        %v1656 = vmax.f32 %v483, %v568
        %v1657 = vmax.f32 %v487, %v568
        %v1658 = vmax.f32 %v491, %v568
        %v1659 = vmax.f32 %v495, %v568
        %v1660 = vmax.f32 %v499, %v568
        %v1661 = vmax.f32 %v503, %v568
        %v1662 = vmax.f32 %v507, %v568
        %v1663 = vmax.f32 %v511, %v568
        %v1664 = vmax.f32 %v515, %v568
        %v1665 = vmax.f32 %v519, %v568
        %v1666 = vmax.f32 %v523, %v568
        %v1667 = vmax.f32 %v527, %v568
        %v1668 = vmax.f32 %v531, %v568
        %v1669 = vmax.f32 %v535, %v568
        %v1670 = vmax.f32 %v539, %v568
        %v1671 = vmax.f32 %v543, %v568
        %v1672 = vmax.f32 %v547, %v568
        %v1673 = vmax.f32 %v551, %v568
        %v1674 = vmax.f32 %v555, %v568
        %v1675 = vmax.f32 %v559, %v568
        %v1676 = vmax.f32 %v563, %v568
        %v1677 = vsub.f32 %v1613, %v1645
        %v1678 = vsub.f32 %v1614, %v1646
        %v1679 = vsub.f32 %v1615, %v1647
        %v1680 = vsub.f32 %v1616, %v1648
        %v1681 = vsub.f32 %v1617, %v1649
        %v1682 = vsub.f32 %v1618, %v1650
        %v1683 = vsub.f32 %v1619, %v1651
        %v1684 = vsub.f32 %v1620, %v1652
        %v1685 = vsub.f32 %v1621, %v1653
        %v1686 = vsub.f32 %v1622, %v1654
        %v1687 = vsub.f32 %v1623, %v1655
        %v1688 = vsub.f32 %v1624, %v1656
        %v1689 = vsub.f32 %v1625, %v1657
        %v1690 = vsub.f32 %v1626, %v1658
        %v1691 = vsub.f32 %v1627, %v1659
        %v1692 = vsub.f32 %v1628, %v1660
        %v1693 = vsub.f32 %v1629, %v1661
        %v1694 = vsub.f32 %v1630, %v1662
        %v1695 = vsub.f32 %v1631, %v1663
        %v1696 = vsub.f32 %v1632, %v1664
        %v1697 = vsub.f32 %v1633, %v1665
        %v1698 = vsub.f32 %v1634, %v1666
        %v1699 = vsub.f32 %v1635, %v1667
        %v1700 = vsub.f32 %v1636, %v1668
        %v1701 = vsub.f32 %v1637, %v1669
        %v1702 = vsub.f32 %v1638, %v1670
        %v1703 = vsub.f32 %v1639, %v1671
        %v1704 = vsub.f32 %v1640, %v1672
        %v1705 = vsub.f32 %v1641, %v1673
        %v1706 = vsub.f32 %v1642, %v1674
        %v1707 = vsub.f32 %v1643, %v1675
        %v1708 = vsub.f32 %v1644, %v1676
        %v1709 = vmax.f32 %v1677, 0.0
        %v1710 = vmax.f32 %v1678, 0.0
        %v1711 = vmax.f32 %v1679, 0.0
        %v1712 = vmax.f32 %v1680, 0.0
        %v1713 = vmax.f32 %v1681, 0.0
        %v1714 = vmax.f32 %v1682, 0.0
        %v1715 = vmax.f32 %v1683, 0.0
        %v1716 = vmax.f32 %v1684, 0.0
        %v1717 = vmax.f32 %v1685, 0.0
        %v1718 = vmax.f32 %v1686, 0.0
        %v1719 = vmax.f32 %v1687, 0.0
        %v1720 = vmax.f32 %v1688, 0.0
        %v1721 = vmax.f32 %v1689, 0.0
        %v1722 = vmax.f32 %v1690, 0.0
        %v1723 = vmax.f32 %v1691, 0.0
        %v1724 = vmax.f32 %v1692, 0.0
        %v1725 = vmax.f32 %v1693, 0.0
        %v1726 = vmax.f32 %v1694, 0.0
        %v1727 = vmax.f32 %v1695, 0.0
        %v1728 = vmax.f32 %v1696, 0.0
        %v1729 = vmax.f32 %v1697, 0.0
        %v1730 = vmax.f32 %v1698, 0.0
        %v1731 = vmax.f32 %v1699, 0.0
        %v1732 = vmax.f32 %v1700, 0.0
        %v1733 = vmax.f32 %v1701, 0.0
        %v1734 = vmax.f32 %v1702, 0.0
        %v1735 = vmax.f32 %v1703, 0.0
        %v1736 = vmax.f32 %v1704, 0.0
        %v1737 = vmax.f32 %v1705, 0.0
        %v1738 = vmax.f32 %v1706, 0.0
        %v1739 = vmax.f32 %v1707, 0.0
        %v1740 = vmax.f32 %v1708, 0.0
        %v1741 = vmin.f32 %v1091, %v1220
        %v1742 = vmin.f32 %v1095, %v1220
        %v1743 = vmin.f32 %v1099, %v1220
        %v1744 = vmin.f32 %v1103, %v1220
        %v1745 = vmin.f32 %v1107, %v1220
        %v1746 = vmin.f32 %v1111, %v1220
        %v1747 = vmin.f32 %v1115, %v1220
        %v1748 = vmin.f32 %v1119, %v1220
        %v1749 = vmin.f32 %v1123, %v1220
        %v1750 = vmin.f32 %v1127, %v1220
        %v1751 = vmin.f32 %v1131, %v1220
        %v1752 = vmin.f32 %v1135, %v1220
        %v1753 = vmin.f32 %v1139, %v1220
        %v1754 = vmin.f32 %v1143, %v1220
        %v1755 = vmin.f32 %v1147, %v1220
        %v1756 = vmin.f32 %v1151, %v1220
        %v1757 = vmin.f32 %v1155, %v1220
        %v1758 = vmin.f32 %v1159, %v1220
        %v1759 = vmin.f32 %v1163, %v1220
        %v1760 = vmin.f32 %v1167, %v1220
        %v1761 = vmin.f32 %v1171, %v1220
        %v1762 = vmin.f32 %v1175, %v1220
        %v1763 = vmin.f32 %v1179, %v1220
        %v1764 = vmin.f32 %v1183, %v1220
        %v1765 = vmin.f32 %v1187, %v1220
        %v1766 = vmin.f32 %v1191, %v1220
        %v1767 = vmin.f32 %v1195, %v1220
        %v1768 = vmin.f32 %v1199, %v1220
        %v1769 = vmin.f32 %v1203, %v1220
        %v1770 = vmin.f32 %v1207, %v1220
        %v1771 = vmin.f32 %v1211, %v1220
        %v1772 = vmin.f32 %v1215, %v1220
        %v1773 = vmax.f32 %v635, %v764
        %v1774 = vmax.f32 %v639, %v764
        %v1775 = vmax.f32 %v643, %v764
        %v1776 = vmax.f32 %v647, %v764
        %v1777 = vmax.f32 %v651, %v764
        %v1778 = vmax.f32 %v655, %v764
        %v1779 = vmax.f32 %v659, %v764
        %v1780 = vmax.f32 %v663, %v764
        %v1781 = vmax.f32 %v667, %v764
        %v1782 = vmax.f32 %v671, %v764
        %v1783 = vmax.f32 %v675, %v764
        %v1784 = vmax.f32 %v679, %v764
        %v1785 = vmax.f32 %v683, %v764
        %v1786 = vmax.f32 %v687, %v764
        %v1787 = vmax.f32 %v691, %v764
        %v1788 = vmax.f32 %v695, %v764
        %v1789 = vmax.f32 %v699, %v764
        %v1790 = vmax.f32 %v703, %v764
        %v1791 = vmax.f32 %v707, %v764
        %v1792 = vmax.f32 %v711, %v764
        %v1793 = vmax.f32 %v715, %v764
        %v1794 = vmax.f32 %v719, %v764
        %v1795 = vmax.f32 %v723, %v764
        %v1796 = vmax.f32 %v727, %v764
        %v1797 = vmax.f32 %v731, %v764
        %v1798 = vmax.f32 %v735, %v764
        %v1799 = vmax.f32 %v739, %v764
        %v1800 = vmax.f32 %v743, %v764
        %v1801 = vmax.f32 %v747, %v764
        %v1802 = vmax.f32 %v751, %v764
        %v1803 = vmax.f32 %v755, %v764
        %v1804 = vmax.f32 %v759, %v764
        %v1805 = vsub.f32 %v1741, %v1773
        %v1806 = vsub.f32 %v1742, %v1774
        %v1807 = vsub.f32 %v1743, %v1775
        %v1808 = vsub.f32 %v1744, %v1776
        %v1809 = vsub.f32 %v1745, %v1777
        %v1810 = vsub.f32 %v1746, %v1778
        %v1811 = vsub.f32 %v1747, %v1779
        %v1812 = vsub.f32 %v1748, %v1780
        %v1813 = vsub.f32 %v1749, %v1781
        %v1814 = vsub.f32 %v1750, %v1782
        %v1815 = vsub.f32 %v1751, %v1783
        %v1816 = vsub.f32 %v1752, %v1784
        %v1817 = vsub.f32 %v1753, %v1785
        %v1818 = vsub.f32 %v1754, %v1786
        %v1819 = vsub.f32 %v1755, %v1787
        %v1820 = vsub.f32 %v1756, %v1788
        %v1821 = vsub.f32 %v1757, %v1789
        %v1822 = vsub.f32 %v1758, %v1790
        %v1823 = vsub.f32 %v1759, %v1791
        %v1824 = vsub.f32 %v1760, %v1792
        %v1825 = vsub.f32 %v1761, %v1793
        %v1826 = vsub.f32 %v1762, %v1794
        %v1827 = vsub.f32 %v1763, %v1795
        %v1828 = vsub.f32 %v1764, %v1796
        %v1829 = vsub.f32 %v1765, %v1797
        %v1830 = vsub.f32 %v1766, %v1798
        %v1831 = vsub.f32 %v1767, %v1799
        %v1832 = vsub.f32 %v1768, %v1800
        %v1833 = vsub.f32 %v1769, %v1801
        %v1834 = vsub.f32 %v1770, %v1802
        %v1835 = vsub.f32 %v1771, %v1803
        %v1836 = vsub.f32 %v1772, %v1804
        %v1837 = vmax.f32 %v1805, 0.0
        %v1838 = vmax.f32 %v1806, 0.0
        %v1839 = vmax.f32 %v1807, 0.0
        %v1840 = vmax.f32 %v1808, 0.0
        %v1841 = vmax.f32 %v1809, 0.0
        %v1842 = vmax.f32 %v1810, 0.0
        %v1843 = vmax.f32 %v1811, 0.0
        %v1844 = vmax.f32 %v1812, 0.0
        %v1845 = vmax.f32 %v1813, 0.0
        %v1846 = vmax.f32 %v1814, 0.0
        %v1847 = vmax.f32 %v1815, 0.0
        %v1848 = vmax.f32 %v1816, 0.0
        %v1849 = vmax.f32 %v1817, 0.0
        %v1850 = vmax.f32 %v1818, 0.0
        %v1851 = vmax.f32 %v1819, 0.0
        %v1852 = vmax.f32 %v1820, 0.0
        %v1853 = vmax.f32 %v1821, 0.0
        %v1854 = vmax.f32 %v1822, 0.0
        %v1855 = vmax.f32 %v1823, 0.0
        %v1856 = vmax.f32 %v1824, 0.0
        %v1857 = vmax.f32 %v1825, 0.0
        %v1858 = vmax.f32 %v1826, 0.0
        %v1859 = vmax.f32 %v1827, 0.0
        %v1860 = vmax.f32 %v1828, 0.0
        %v1861 = vmax.f32 %v1829, 0.0
        %v1862 = vmax.f32 %v1830, 0.0
        %v1863 = vmax.f32 %v1831, 0.0
        %v1864 = vmax.f32 %v1832, 0.0
        %v1865 = vmax.f32 %v1833, 0.0
        %v1866 = vmax.f32 %v1834, 0.0
        %v1867 = vmax.f32 %v1835, 0.0
        %v1868 = vmax.f32 %v1836, 0.0
        %v1869 = vmul.f32 %v1709, %v1837
        %v1870 = vmul.f32 %v1710, %v1838
        %v1871 = vmul.f32 %v1711, %v1839
        %v1872 = vmul.f32 %v1712, %v1840
        %v1873 = vmul.f32 %v1713, %v1841
        %v1874 = vmul.f32 %v1714, %v1842
        %v1875 = vmul.f32 %v1715, %v1843
        %v1876 = vmul.f32 %v1716, %v1844
        %v1877 = vmul.f32 %v1717, %v1845
        %v1878 = vmul.f32 %v1718, %v1846
        %v1879 = vmul.f32 %v1719, %v1847
        %v1880 = vmul.f32 %v1720, %v1848
        %v1881 = vmul.f32 %v1721, %v1849
        %v1882 = vmul.f32 %v1722, %v1850
        %v1883 = vmul.f32 %v1723, %v1851
        %v1884 = vmul.f32 %v1724, %v1852
        %v1885 = vmul.f32 %v1725, %v1853
        %v1886 = vmul.f32 %v1726, %v1854
        %v1887 = vmul.f32 %v1727, %v1855
        %v1888 = vmul.f32 %v1728, %v1856
        %v1889 = vmul.f32 %v1729, %v1857
        %v1890 = vmul.f32 %v1730, %v1858
        %v1891 = vmul.f32 %v1731, %v1859
        %v1892 = vmul.f32 %v1732, %v1860
        %v1893 = vmul.f32 %v1733, %v1861
        %v1894 = vmul.f32 %v1734, %v1862
        %v1895 = vmul.f32 %v1735, %v1863
        %v1896 = vmul.f32 %v1736, %v1864
        %v1897 = vmul.f32 %v1737, %v1865
        %v1898 = vmul.f32 %v1738, %v1866
        %v1899 = vmul.f32 %v1739, %v1867
        %v1900 = vmul.f32 %v1740, %v1868
        %1902 = vset.pattern.permute.xlu0 3
        %1903 = vperm.xlu0 %1902, %v1573
        %v1904 = vpop.permute.xlu0 %1903
        %1907 = vset.pattern.permute.xlu0 3
        %1908 = vperm.xlu0 %1907, %v1574
        %v1909 = vpop.permute.xlu0 %1908
        %1912 = vset.pattern.permute.xlu0 3
        %1913 = vperm.xlu0 %1912, %v1575
        %v1914 = vpop.permute.xlu0 %1913
        %1917 = vset.pattern.permute.xlu0 3
        %1918 = vperm.xlu0 %1917, %v1576
        %v1919 = vpop.permute.xlu0 %1918
        %1922 = vset.pattern.permute.xlu0 3
        %1923 = vperm.xlu0 %1922, %v1577
        %v1924 = vpop.permute.xlu0 %1923
        %1927 = vset.pattern.permute.xlu0 3
        %1928 = vperm.xlu0 %1927, %v1578
        %v1929 = vpop.permute.xlu0 %1928
        %1932 = vset.pattern.permute.xlu0 3
        %1933 = vperm.xlu0 %1932, %v1579
        %v1934 = vpop.permute.xlu0 %1933
        %1937 = vset.pattern.permute.xlu0 3
        %1938 = vperm.xlu0 %1937, %v1580
        %v1939 = vpop.permute.xlu0 %1938
        %1942 = vset.pattern.permute.xlu0 3
        %1943 = vperm.xlu0 %1942, %v1581
        %v1944 = vpop.permute.xlu0 %1943
        %1947 = vset.pattern.permute.xlu0 3
        %1948 = vperm.xlu0 %1947, %v1582
        %v1949 = vpop.permute.xlu0 %1948
        %1952 = vset.pattern.permute.xlu0 3
        %1953 = vperm.xlu0 %1952, %v1583
        %v1954 = vpop.permute.xlu0 %1953
        %1957 = vset.pattern.permute.xlu0 3
        %1958 = vperm.xlu0 %1957, %v1584
        %v1959 = vpop.permute.xlu0 %1958
        %1962 = vset.pattern.permute.xlu0 3
        %1963 = vperm.xlu0 %1962, %v1585
        %v1964 = vpop.permute.xlu0 %1963
        %1967 = vset.pattern.permute.xlu0 3
        %1968 = vperm.xlu0 %1967, %v1586
        %v1969 = vpop.permute.xlu0 %1968
        %1972 = vset.pattern.permute.xlu0 3
        %1973 = vperm.xlu0 %1972, %v1587
        %v1974 = vpop.permute.xlu0 %1973
        %1977 = vset.pattern.permute.xlu0 3
        %1978 = vperm.xlu0 %1977, %v1588
        %v1979 = vpop.permute.xlu0 %1978
        %1982 = vset.pattern.permute.xlu0 3
        %1983 = vperm.xlu0 %1982, %v1589
        %v1984 = vpop.permute.xlu0 %1983
        %1987 = vset.pattern.permute.xlu0 3
        %1988 = vperm.xlu0 %1987, %v1590
        %v1989 = vpop.permute.xlu0 %1988
        %1992 = vset.pattern.permute.xlu0 3
        %1993 = vperm.xlu0 %1992, %v1591
        %v1994 = vpop.permute.xlu0 %1993
        %1997 = vset.pattern.permute.xlu0 3
        %1998 = vperm.xlu0 %1997, %v1592
        %v1999 = vpop.permute.xlu0 %1998
        %2002 = vset.pattern.permute.xlu0 3
        %2003 = vperm.xlu0 %2002, %v1593
        %v2004 = vpop.permute.xlu0 %2003
        %2007 = vset.pattern.permute.xlu0 3
        %2008 = vperm.xlu0 %2007, %v1594
        %v2009 = vpop.permute.xlu0 %2008
        %2012 = vset.pattern.permute.xlu0 3
        %2013 = vperm.xlu0 %2012, %v1595
        %v2014 = vpop.permute.xlu0 %2013
        %2017 = vset.pattern.permute.xlu0 3
        %2018 = vperm.xlu0 %2017, %v1596
        %v2019 = vpop.permute.xlu0 %2018
        %2022 = vset.pattern.permute.xlu0 3
        %2023 = vperm.xlu0 %2022, %v1597
        %v2024 = vpop.permute.xlu0 %2023
        %2027 = vset.pattern.permute.xlu0 3
        %2028 = vperm.xlu0 %2027, %v1598
        %v2029 = vpop.permute.xlu0 %2028
        %2032 = vset.pattern.permute.xlu0 3
        %2033 = vperm.xlu0 %2032, %v1599
        %v2034 = vpop.permute.xlu0 %2033
        %2037 = vset.pattern.permute.xlu0 3
        %2038 = vperm.xlu0 %2037, %v1600
        %v2039 = vpop.permute.xlu0 %2038
        %2042 = vset.pattern.permute.xlu0 3
        %2043 = vperm.xlu0 %2042, %v1601
        %v2044 = vpop.permute.xlu0 %2043
        %2047 = vset.pattern.permute.xlu0 3
        %2048 = vperm.xlu0 %2047, %v1602
        %v2049 = vpop.permute.xlu0 %2048
        %2052 = vset.pattern.permute.xlu0 3
        %2053 = vperm.xlu0 %2052, %v1603
        %v2054 = vpop.permute.xlu0 %2053
        %2057 = vset.pattern.permute.xlu0 3
        %2058 = vperm.xlu0 %2057, %v1604
        %v2059 = vpop.permute.xlu0 %2058
        %v2061 = vlaneseq
        %v2062 = vshrl.u32 %v2061, 7
        %v2063 = vsub.s32 3, %v2062
        %v2064 = vrot.slane %v1612, %v2063
        %v2065 = vadd.f32 %v1904, %v2064
        %v2066 = vadd.f32 %v1909, %v2064
        %v2067 = vadd.f32 %v1914, %v2064
        %v2068 = vadd.f32 %v1919, %v2064
        %v2069 = vadd.f32 %v1924, %v2064
        %v2070 = vadd.f32 %v1929, %v2064
        %v2071 = vadd.f32 %v1934, %v2064
        %v2072 = vadd.f32 %v1939, %v2064
        %v2073 = vadd.f32 %v1944, %v2064
        %v2074 = vadd.f32 %v1949, %v2064
        %v2075 = vadd.f32 %v1954, %v2064
        %v2076 = vadd.f32 %v1959, %v2064
        %v2077 = vadd.f32 %v1964, %v2064
        %v2078 = vadd.f32 %v1969, %v2064
        %v2079 = vadd.f32 %v1974, %v2064
        %v2080 = vadd.f32 %v1979, %v2064
        %v2081 = vadd.f32 %v1984, %v2064
        %v2082 = vadd.f32 %v1989, %v2064
        %v2083 = vadd.f32 %v1994, %v2064
        %v2084 = vadd.f32 %v1999, %v2064
        %v2085 = vadd.f32 %v2004, %v2064
        %v2086 = vadd.f32 %v2009, %v2064
        %v2087 = vadd.f32 %v2014, %v2064
        %v2088 = vadd.f32 %v2019, %v2064
        %v2089 = vadd.f32 %v2024, %v2064
        %v2090 = vadd.f32 %v2029, %v2064
        %v2091 = vadd.f32 %v2034, %v2064
        %v2092 = vadd.f32 %v2039, %v2064
        %v2093 = vadd.f32 %v2044, %v2064
        %v2094 = vadd.f32 %v2049, %v2064
        %v2095 = vadd.f32 %v2054, %v2064
        %v2096 = vadd.f32 %v2059, %v2064
        %v2097 = vsub.f32 %v2065, %v1869
        %v2098 = vsub.f32 %v2066, %v1870
        %v2099 = vsub.f32 %v2067, %v1871
        %v2100 = vsub.f32 %v2068, %v1872
        %v2101 = vsub.f32 %v2069, %v1873
        %v2102 = vsub.f32 %v2070, %v1874
        %v2103 = vsub.f32 %v2071, %v1875
        %v2104 = vsub.f32 %v2072, %v1876
        %v2105 = vsub.f32 %v2073, %v1877
        %v2106 = vsub.f32 %v2074, %v1878
        %v2107 = vsub.f32 %v2075, %v1879
        %v2108 = vsub.f32 %v2076, %v1880
        %v2109 = vsub.f32 %v2077, %v1881
        %v2110 = vsub.f32 %v2078, %v1882
        %v2111 = vsub.f32 %v2079, %v1883
        %v2112 = vsub.f32 %v2080, %v1884
        %v2113 = vsub.f32 %v2081, %v1885
        %v2114 = vsub.f32 %v2082, %v1886
        %v2115 = vsub.f32 %v2083, %v1887
        %v2116 = vsub.f32 %v2084, %v1888
        %v2117 = vsub.f32 %v2085, %v1889
        %v2118 = vsub.f32 %v2086, %v1890
        %v2119 = vsub.f32 %v2087, %v1891
        %v2120 = vsub.f32 %v2088, %v1892
        %v2121 = vsub.f32 %v2089, %v1893
        %v2122 = vsub.f32 %v2090, %v1894
        %v2123 = vsub.f32 %v2091, %v1895
        %v2124 = vsub.f32 %v2092, %v1896
        %v2125 = vsub.f32 %v2093, %v1897
        %v2126 = vsub.f32 %v2094, %v1898
        %v2127 = vsub.f32 %v2095, %v1899
        %v2128 = vsub.f32 %v2096, %v1900
        %v2129 = vrcp.pop %v2097
        %v2130 = vrcp.pop %v2098
        %v2131 = vrcp.pop %v2099
        %v2132 = vrcp.pop %v2100
        %v2133 = vrcp.pop %v2101
        %v2134 = vrcp.pop %v2102
        %v2135 = vrcp.pop %v2103
        %v2136 = vrcp.pop %v2104
        %v2137 = vrcp.pop %v2105
        %v2138 = vrcp.pop %v2106
        %v2139 = vrcp.pop %v2107
        %v2140 = vrcp.pop %v2108
        %v2141 = vrcp.pop %v2109
        %v2142 = vrcp.pop %v2110
        %v2143 = vrcp.pop %v2111
        %v2144 = vrcp.pop %v2112
        %v2145 = vrcp.pop %v2113
        %v2146 = vrcp.pop %v2114
        %v2147 = vrcp.pop %v2115
        %v2148 = vrcp.pop %v2116
        %v2149 = vrcp.pop %v2117
        %v2150 = vrcp.pop %v2118
        %v2151 = vrcp.pop %v2119
        %v2152 = vrcp.pop %v2120
        %v2153 = vrcp.pop %v2121
        %v2154 = vrcp.pop %v2122
        %v2155 = vrcp.pop %v2123
        %v2156 = vrcp.pop %v2124
        %v2157 = vrcp.pop %v2125
        %v2158 = vrcp.pop %v2126
        %v2159 = vrcp.pop %v2127
        %v2160 = vrcp.pop %v2128
        %v2161 = vmul.f32 %v1869, %v2129
        %v2162 = vmul.f32 %v1870, %v2130
        %v2163 = vmul.f32 %v1871, %v2131
        %v2164 = vmul.f32 %v1872, %v2132
        %v2165 = vmul.f32 %v1873, %v2133
        %v2166 = vmul.f32 %v1874, %v2134
        %v2167 = vmul.f32 %v1875, %v2135
        %v2168 = vmul.f32 %v1876, %v2136
        %v2169 = vmul.f32 %v1877, %v2137
        %v2170 = vmul.f32 %v1878, %v2138
        %v2171 = vmul.f32 %v1879, %v2139
        %v2172 = vmul.f32 %v1880, %v2140
        %v2173 = vmul.f32 %v1881, %v2141
        %v2174 = vmul.f32 %v1882, %v2142
        %v2175 = vmul.f32 %v1883, %v2143
        %v2176 = vmul.f32 %v1884, %v2144
        %v2177 = vmul.f32 %v1885, %v2145
        %v2178 = vmul.f32 %v1886, %v2146
        %v2179 = vmul.f32 %v1887, %v2147
        %v2180 = vmul.f32 %v1888, %v2148
        %v2181 = vmul.f32 %v1889, %v2149
        %v2182 = vmul.f32 %v1890, %v2150
        %v2183 = vmul.f32 %v1891, %v2151
        %v2184 = vmul.f32 %v1892, %v2152
        %v2185 = vmul.f32 %v1893, %v2153
        %v2186 = vmul.f32 %v1894, %v2154
        %v2187 = vmul.f32 %v1895, %v2155
        %v2188 = vmul.f32 %v1896, %v2156
        %v2189 = vmul.f32 %v1897, %v2157
        %v2190 = vmul.f32 %v1898, %v2158
        %v2191 = vmul.f32 %v1899, %v2159
        %v2192 = vmul.f32 %v1900, %v2160
        %v2193 = vadd.f32 %v1285, %v405
        %v2194 = vadd.f32 %v1286, %v406
        %v2195 = vadd.f32 %v1287, %v407
        %v2196 = vadd.f32 %v1288, %v408
        %v2197 = vadd.f32 %v1289, %v409
        %v2198 = vadd.f32 %v1290, %v410
        %v2199 = vadd.f32 %v1291, %v411
        %v2200 = vadd.f32 %v1292, %v412
        %v2201 = vadd.f32 %v1293, %v413
        %v2202 = vadd.f32 %v1294, %v414
        %v2203 = vadd.f32 %v1295, %v415
        %v2204 = vadd.f32 %v1296, %v416
        %v2205 = vadd.f32 %v1297, %v417
        %v2206 = vadd.f32 %v1298, %v418
        %v2207 = vadd.f32 %v1299, %v419
        %v2208 = vadd.f32 %v1300, %v420
        %v2209 = vadd.f32 %v1301, %v421
        %v2210 = vadd.f32 %v1302, %v422
        %v2211 = vadd.f32 %v1303, %v423
        %v2212 = vadd.f32 %v1304, %v424
        %v2213 = vadd.f32 %v1305, %v425
        %v2214 = vadd.f32 %v1306, %v426
        %v2215 = vadd.f32 %v1307, %v427
        %v2216 = vadd.f32 %v1308, %v428
        %v2217 = vadd.f32 %v1309, %v429
        %v2218 = vadd.f32 %v1310, %v430
        %v2219 = vadd.f32 %v1311, %v431
        %v2220 = vadd.f32 %v1312, %v432
        %v2221 = vadd.f32 %v1313, %v433
        %v2222 = vadd.f32 %v1314, %v434
        %v2223 = vadd.f32 %v1315, %v435
        %v2224 = vadd.f32 %v1316, %v436
        %v2225 = vmul.f32 %v2161, 2.0
        %v2226 = vmul.f32 %v2162, 2.0
        %v2227 = vmul.f32 %v2163, 2.0
        %v2228 = vmul.f32 %v2164, 2.0
        %v2229 = vmul.f32 %v2165, 2.0
        %v2230 = vmul.f32 %v2166, 2.0
        %v2231 = vmul.f32 %v2167, 2.0
        %v2232 = vmul.f32 %v2168, 2.0
        %v2233 = vmul.f32 %v2169, 2.0
        %v2234 = vmul.f32 %v2170, 2.0
        %v2235 = vmul.f32 %v2171, 2.0
        %v2236 = vmul.f32 %v2172, 2.0
        %v2237 = vmul.f32 %v2173, 2.0
        %v2238 = vmul.f32 %v2174, 2.0
        %v2239 = vmul.f32 %v2175, 2.0
        %v2240 = vmul.f32 %v2176, 2.0
        %v2241 = vmul.f32 %v2177, 2.0
        %v2242 = vmul.f32 %v2178, 2.0
        %v2243 = vmul.f32 %v2179, 2.0
        %v2244 = vmul.f32 %v2180, 2.0
        %v2245 = vmul.f32 %v2181, 2.0
        %v2246 = vmul.f32 %v2182, 2.0
        %v2247 = vmul.f32 %v2183, 2.0
        %v2248 = vmul.f32 %v2184, 2.0
        %v2249 = vmul.f32 %v2185, 2.0
        %v2250 = vmul.f32 %v2186, 2.0
        %v2251 = vmul.f32 %v2187, 2.0
        %v2252 = vmul.f32 %v2188, 2.0
        %v2253 = vmul.f32 %v2189, 2.0
        %v2254 = vmul.f32 %v2190, 2.0
        %v2255 = vmul.f32 %v2191, 2.0
        %v2256 = vmul.f32 %v2192, 2.0
        %v2257 = vsub.f32 %v2193, %v2225
        %v2258 = vsub.f32 %v2194, %v2226
        %v2259 = vsub.f32 %v2195, %v2227
        %v2260 = vsub.f32 %v2196, %v2228
        %v2261 = vsub.f32 %v2197, %v2229
        %v2262 = vsub.f32 %v2198, %v2230
        %v2263 = vsub.f32 %v2199, %v2231
        %v2264 = vsub.f32 %v2200, %v2232
        %v2265 = vsub.f32 %v2201, %v2233
        %v2266 = vsub.f32 %v2202, %v2234
        %v2267 = vsub.f32 %v2203, %v2235
        %v2268 = vsub.f32 %v2204, %v2236
        %v2269 = vsub.f32 %v2205, %v2237
        %v2270 = vsub.f32 %v2206, %v2238
        %v2271 = vsub.f32 %v2207, %v2239
        %v2272 = vsub.f32 %v2208, %v2240
        %v2273 = vsub.f32 %v2209, %v2241
        %v2274 = vsub.f32 %v2210, %v2242
        %v2275 = vsub.f32 %v2211, %v2243
        %v2276 = vsub.f32 %v2212, %v2244
        %v2277 = vsub.f32 %v2213, %v2245
        %v2278 = vsub.f32 %v2214, %v2246
        %v2279 = vsub.f32 %v2215, %v2247
        %v2280 = vsub.f32 %v2216, %v2248
        %v2281 = vsub.f32 %v2217, %v2249
        %v2282 = vsub.f32 %v2218, %v2250
        %v2283 = vsub.f32 %v2219, %v2251
        %v2284 = vsub.f32 %v2220, %v2252
        %v2285 = vsub.f32 %v2221, %v2253
        %v2286 = vsub.f32 %v2222, %v2254
        %v2287 = vsub.f32 %v2223, %v2255
        %v2288 = vsub.f32 %v2224, %v2256
        %2289 = vst [vmem:[%s164] sm:$0xff] %v2257
        %2290 = vst [vmem:[%s164 + $0x8] sm:$0xff] %v2258
        %2291 = vst [vmem:[%s164 + $0x10] sm:$0xff] %v2259
        %2292 = vst [vmem:[%s164 + $0x18] sm:$0xff] %v2260
        %2293 = vst [vmem:[%s164 + $0x20] sm:$0xff] %v2261
        %2294 = vst [vmem:[%s164 + $0x28] sm:$0xff] %v2262
        %2295 = vst [vmem:[%s164 + $0x30] sm:$0xff] %v2263
        %2296 = vst [vmem:[%s164 + $0x38] sm:$0xff] %v2264
        %2297 = vst [vmem:[%s164 + $0x40] sm:$0xff] %v2265
        %2298 = vst [vmem:[%s164 + $0x48] sm:$0xff] %v2266
        %2299 = vst [vmem:[%s164 + $0x50] sm:$0xff] %v2267
        %2300 = vst [vmem:[%s164 + $0x58] sm:$0xff] %v2268
        %2301 = vst [vmem:[%s164 + $0x60] sm:$0xff] %v2269
        %2302 = vst [vmem:[%s164 + $0x68] sm:$0xff] %v2270
        %2303 = vst [vmem:[%s164 + $0x70] sm:$0xff] %v2271
        %2304 = vst [vmem:[%s164 + $0x78] sm:$0xff] %v2272
        %2305 = vst [vmem:[%s164 + $0x80] sm:$0xff] %v2273
        %2306 = vst [vmem:[%s164 + $0x88] sm:$0xff] %v2274
        %2307 = vst [vmem:[%s164 + $0x90] sm:$0xff] %v2275
        %2308 = vst [vmem:[%s164 + $0x98] sm:$0xff] %v2276
        %2309 = vst [vmem:[%s164 + $0xa0] sm:$0xff] %v2277
        %2310 = vst [vmem:[%s164 + $0xa8] sm:$0xff] %v2278
        %2311 = vst [vmem:[%s164 + $0xb0] sm:$0xff] %v2279
        %2312 = vst [vmem:[%s164 + $0xb8] sm:$0xff] %v2280
        %2313 = vst [vmem:[%s164 + $0xc0] sm:$0xff] %v2281
        %2314 = vst [vmem:[%s164 + $0xc8] sm:$0xff] %v2282
        %2315 = vst [vmem:[%s164 + $0xd0] sm:$0xff] %v2283
        %2316 = vst [vmem:[%s164 + $0xd8] sm:$0xff] %v2284
        %2317 = vst [vmem:[%s164 + $0xe0] sm:$0xff] %v2285
        %2318 = vst [vmem:[%s164 + $0xe8] sm:$0xff] %v2286
        %2319 = vst [vmem:[%s164 + $0xf0] sm:$0xff] %v2287
        %2320 = vst [vmem:[%s164 + $0xf8] sm:$0xff] %v2288
        %s2321 = sand.u32 %s90, 1
        %s2322 = scalar_lea.sflag [#allocation3], %s2321
        %s2323 = sand.u32 %s90, 1
        %s2324 = smul.addr %s2323, 256
        %s2325 = scalar_lea.vmem [#allocation2], %s2324
        // Predicated region
        $region29: #{tpu_custom_call.1} parent=27 // pred_check
          %p2326 = pneg %p100
        $region30: #{tpu_custom_call.1} parent=27 // pred_check_branch
          %2328 = sbr.rel (%p2326) target = $region32
        $region31: #{tpu_custom_call.1} parent=27 // pred_region
          %s2329 = smul.u32 32, %s20
          %s2331 = ssub.s32 4096, 4096
          %2332 = vsyncadd %s2322, %s2331
          %s2333 = smul.addr %s2329, 2
          %s2334 = sadd.s32 %s21, %s2333
          %s2335 = smul.addr %s2334, 128
          %s2336 = scalar_lea.hbm %s2, %s2335
          %s2337 = sshll.u32 %s2325, 4
          %s2338 = int_to_ptr.vmem [resolvable:$true] %s2337
          %2343 = dma.vmem_to_hbm [thread:$0]  %s2338, 4096, %s2336, %s2322, 128, 256, 8
        $region32: #{tpu_custom_call.1} parent=27 // pred_fallthru
          _
      $region28: #{tpu_custom_call.1} parent=5 // pred_fallthru
        _
      %p2344 = scmp.le.s32.totalorder 2, %s11
      // Predicated region
      $region33: #{tpu_custom_call.1} parent=5 // pred_check
        %p2345 = pneg %p2344
      $region34: #{tpu_custom_call.1} parent=5 // pred_check_branch
        %2347 = sbr.rel (%p2345) target = $region36
      $region35: #{tpu_custom_call.1} parent=5 // pred_region
        %s2348 = ssub.s32 %s11, 2
        // Predicated region
        $region37: #{tpu_custom_call.1} parent=35 // pred_check
          %p2349 = pneg %p106
        $region38: #{tpu_custom_call.1} parent=35 // pred_check_branch
          %2351 = sbr.rel (%p2349) target = $region40
        $region39: #{tpu_custom_call.1} parent=35 // pred_region
          %s2352 = sand.u32 %s91, 1
          %s2353 = scalar_lea.sflag [#allocation3], %s2352
          %s2354 = sand.u32 %s91, 1
          %s2355 = smul.addr %s2354, 256
          %s2356 = scalar_lea.vmem [#allocation2], %s2355
          %2357 = dma.done %s2353, 4096
        $region40: #{tpu_custom_call.1} parent=35 // pred_fallthru
          _
      $region36: #{tpu_custom_call.1} parent=5 // pred_fallthru
        _
    $region6: #{tpu_custom_call.1} parent=1 // loop_footer
      %s15 = sadd.s32 1, %s11
    $region7: #{tpu_custom_call.1} parent=1 // loop_footer_branch
      %10 = sbr.rel target = $region3
    $region8: #{tpu_custom_call.1} parent=1 // loop_exit
      _
    %2358 = vsyncpa [#allocation3], 1
    %s2359 = scalar_lea.sflag [#allocation3], 1
    %2360 = vsyncpa %s2359, 1

</llo_original>
